<compile_context>
chip_gen: v7x
topology: tpu7x:2x2x1
jax: 0.10.0
libtpu: 0.0.40
codegen_flags: <defaults>
</compile_context>

<pallas_src>
import functools

import jax
import jax.numpy as jnp
from jax import lax
from jax.experimental import pallas as pl
from jax.experimental.pallas import tpu as pltpu


def basic_block_kernel(x_ref, mask_ref, seg_ref,
                       w1_ref, b1_ref, w2_ref, b2_ref,
                       caw1_ref, cab1_ref, caw2_ref, cab2_ref,
                       paw1_ref, pab1_ref, paw2_ref, pab2_ref,
                       o_ref, *, W, HW):
    xf = x_ref[...]                                   # (C, L) f32, L = Nb*HW
    L = xf.shape[1]
    nb = seg_ref.shape[0]

    def conv3x3(inp, w_ref, b_ref):
        # 3x3 conv (stride 1, zero pad 1) as ONE matmul: the 9 taps are lane
        # rotations of `inp`, zeroed at image borders by the precomputed mask,
        # stacked along sublanes into a (9*C, L) slab and contracted against
        # the weight packed as (Cout, 9*C).  bf16 operands, f32 accumulation.
        parts = []
        for k in range(9):
            dy, dx = k // 3, k % 3
            off = (dy - 1) * W + (dx - 1)
            if off == 0:                              # centre tap: no roll/mask
                parts.append(inp)
            else:
                rolled = pltpu.roll(inp, (-off) % L, axis=1)  # XLU lane rotate
                parts.append(rolled * mask_ref[k])            # (1, L) bcast
        slab = jnp.concatenate(parts, axis=0).astype(jnp.bfloat16)  # (9C, L)
        y = jnp.dot(w_ref[...], slab, preferred_element_type=jnp.float32)
        return y + b_ref[...]

    # out = relu(conv1(x)); out = x + out; out = conv2(out)
    out = jnp.maximum(conv3x3(xf, w1_ref, b1_ref), 0.0)
    out = xf + out
    out = conv3x3(out, w2_ref, b2_ref)

    # ChannelAttention, computed per image so the Nb images sharing the lane
    # axis never mix: seg_ref[n] is the 0/1 indicator of image n's lanes.
    inv_hw = 1.0 / float(HW)
    scale = None
    for n in range(nb):
        seg_n = seg_ref[n]                                            # (1, L)
        z = jnp.sum(out * seg_n, axis=1, keepdims=True) * inv_hw      # (C, 1)
        a1 = jnp.maximum(
            jnp.sum(caw1_ref[...] * z, axis=0, keepdims=True) + cab1_ref[...],
            0.0)                                                      # (1, mid)
        ca = jax.nn.sigmoid(
            jnp.sum(caw2_ref[...] * a1, axis=1, keepdims=True) + cab2_ref[...])
        contrib = ca * seg_n                                          # (C, L)
        scale = contrib if scale is None else scale + contrib
    out = out * scale

    # PixelAttention: 1x1 conv -> relu -> 1x1 conv (to 1 chan) -> sigmoid
    p1 = jnp.maximum(
        jnp.dot(paw1_ref[...], out, preferred_element_type=jnp.float32)
        + pab1_ref[...], 0.0)                                         # (mid, L)
    pa = jax.nn.sigmoid(
        jnp.sum(paw2_ref[...] * p1, axis=0, keepdims=True) + pab2_ref[...])
    out = out * pa

    # final residual
    o_ref[...] = xf + out


def basic_block_pallas(x, kparams, *, nb=None):
    """x: (N, C, H, W) f32.  kparams: output of pack_kernel_params."""
    N, C, H, W = x.shape
    HW = H * W

    if nb is None:
        # Batch images per grid step: amortize per-step pipeline overhead while
        # (a) keeping >= 2 grid steps so both v7x TensorCores get work, and
        # (b) keeping the input tile small enough that double-buffered tiles +
        #     the (9*C, Nb*HW) conv slab fit comfortably in v7x's 64 MiB VMEM.
        nb = 1
        for cand in range(N, 0, -1):
            if N % cand:
                continue
            if N >= 2 and N // cand < 2:
                continue
            if C * cand * HW * 4 > (1 << 20):
                continue
            nb = cand
            break
    assert N % nb == 0
    L = nb * HW
    # TODO(synk): for arbitrary H/W, pad L up to a multiple of 128 (and mask
    # the tail) so output stores stay lane-dense; here H*W already complies.

    # channels-on-sublanes, batch*spatial on lanes
    x_cl = jnp.transpose(x, (1, 0, 2, 3)).reshape(C, N * HW)

    # ---- precomputed grid-invariant constants (no per-step iota/cmp work) ---
    col = jnp.arange(HW, dtype=jnp.int32)
    h_idx, w_idx = col // W, col % W
    taps = []
    for k in range(9):
        dy, dx = k // 3, k % 3
        hh, ww = h_idx + (dy - 1), w_idx + (dx - 1)
        taps.append(((hh >= 0) & (hh < H) & (ww >= 0) & (ww < W))
                    .astype(jnp.float32))
    mask = jnp.tile(jnp.stack(taps), (1, nb)).reshape(9, 1, L)        # (9,1,L)
    seg = (jnp.arange(L, dtype=jnp.int32)[None, :] // HW
           == jnp.arange(nb, dtype=jnp.int32)[:, None])
    seg = seg.astype(jnp.float32).reshape(nb, 1, L)                   # (nb,1,L)

    consts = (mask, seg) + tuple(kparams)

    def inv_spec(a):
        return pl.BlockSpec(a.shape, lambda n, _nd=a.ndim: (0,) * _nd)

    cost = pl.CostEstimate(
        flops=int(2 * 2 * 9 * C * C * HW * N),                 # two 3x3 convs
        transcendentals=int(N * (C + HW)),                     # sigmoids
        bytes_accessed=int(2 * N * C * HW * 4
                           + sum(int(a.size) * a.dtype.itemsize
                                 for a in consts)))

    kernel = functools.partial(basic_block_kernel, W=W, HW=HW)
    y_cl = pl.pallas_call(
        kernel,
        out_shape=jax.ShapeDtypeStruct((C, N * HW), jnp.float32),
        grid=(N // nb,),
        in_specs=[pl.BlockSpec((C, L), lambda n: (0, n))]
                 + [inv_spec(a) for a in consts],
        out_specs=pl.BlockSpec((C, L), lambda n: (0, n)),
        compiler_params=pltpu.CompilerParams(
            dimension_semantics=("parallel",),
            vmem_limit_bytes=32 * 1024 * 1024),
        cost_estimate=cost,
    )(x_cl, *consts)
    return jnp.transpose(y_cl.reshape(C, N, H, W), (1, 0, 2, 3))


# ----------------------------- glue / params --------------------------------

def init_params(key, nf, reduct=8, scale=0.1):
    mid = nf // reduct
    ks = jax.random.split(key, 12)
    rnd = lambda k, shp: jax.random.normal(k, shp, jnp.float32) * scale
    return dict(
        conv1_w=rnd(ks[0], (nf, nf, 3, 3)), conv1_b=rnd(ks[1], (nf,)),
        conv2_w=rnd(ks[2], (nf, nf, 3, 3)), conv2_b=rnd(ks[3], (nf,)),
        ca_w1=rnd(ks[4], (mid, nf, 1, 1)),  ca_b1=rnd(ks[5], (mid,)),
        ca_w2=rnd(ks[6], (nf, mid, 1, 1)),  ca_b2=rnd(ks[7], (nf,)),
        pa_w1=rnd(ks[8], (mid, nf, 1, 1)),  pa_b1=rnd(ks[9], (mid,)),
        pa_w2=rnd(ks[10], (1, mid, 1, 1)),  pa_b2=rnd(ks[11], (1,)),
    )


def pack_kernel_params(p):
    nf = p["conv1_w"].shape[0]
    mid = p["ca_w1"].shape[0]
    # conv weights: (Cout, Cin, 3, 3) -> (Cout, 9*Cin); column = (3*dy+dx)*Cin
    # + cin, matching the tap/channel order of the in-kernel slab.  bf16 for
    # the MXU (f32 accumulation in-kernel).
    w1 = jnp.transpose(p["conv1_w"], (0, 2, 3, 1)).reshape(nf, 9 * nf)
    w2 = jnp.transpose(p["conv2_w"], (0, 2, 3, 1)).reshape(nf, 9 * nf)
    return (
        w1.astype(jnp.bfloat16), p["conv1_b"].reshape(nf, 1),
        w2.astype(jnp.bfloat16), p["conv2_b"].reshape(nf, 1),
        p["ca_w1"][:, :, 0, 0].T,           # (nf, mid)
        p["ca_b1"].reshape(1, mid),
        p["ca_w2"][:, :, 0, 0],             # (nf, mid)
        p["ca_b2"].reshape(nf, 1),
        p["pa_w1"][:, :, 0, 0],             # (mid, nf)
        p["pa_b1"].reshape(mid, 1),
        p["pa_w2"][:, :, 0, 0].T,           # (mid, 1)
        p["pa_b2"].reshape(1, 1),
    )


def conv2d_nchw(x, w, b, padding):
    y = lax.conv_general_dilated(x, w, (1, 1), padding,
                                 dimension_numbers=("NCHW", "OIHW", "NCHW"))
    return y + b[None, :, None, None]


def reference_forward(x, p):
    out = jax.nn.relu(conv2d_nchw(x, p["conv1_w"], p["conv1_b"], "SAME"))
    out = x + out
    out = conv2d_nchw(out, p["conv2_w"], p["conv2_b"], "SAME")
    # channel attention
    z = jnp.mean(out, axis=(2, 3), keepdims=True)
    a = jax.nn.relu(conv2d_nchw(z, p["ca_w1"], p["ca_b1"], "VALID"))
    ca = jax.nn.sigmoid(conv2d_nchw(a, p["ca_w2"], p["ca_b2"], "VALID"))
    out = out * ca
    # pixel attention
    a = jax.nn.relu(conv2d_nchw(out, p["pa_w1"], p["pa_b1"], "VALID"))
    pa = jax.nn.sigmoid(conv2d_nchw(a, p["pa_w2"], p["pa_b2"], "VALID"))
    out = out * pa
    return x + out


if __name__ == "__main__":
    N, C, H, W = 4, 8, 16, 16          # nf=8, reduct=8 -> mid=1; Nb=2, grid=(2,)
    key = jax.random.PRNGKey(0)
    kx, kp = jax.random.split(key)
    x = jax.random.normal(kx, (N, C, H, W), jnp.float32)
    params = init_params(kp, nf=C, reduct=8)
    kparams = pack_kernel_params(params)

    y = jax.block_until_ready(basic_block_pallas(x, kparams))
    y_ref = jax.block_until_ready(reference_forward(x, params))

    # bf16 matmul operands (f32 accumulation) -> tolerance loosened vs f32 ref
    if not jnp.allclose(y, y_ref, atol=5e-2, rtol=1e-2):
        raise AssertionError(
            f"mismatch vs reference, max abs err = {jnp.max(jnp.abs(y - y_ref))}")

    print("KERNEL_OK")
</pallas_src>

<mosaic_0001>
module attributes {stable_mosaic.version = 11 : i64} {
  func.func @basic_block_kernel(%arg0: i32, %arg1: memref<8x512xf32, #tpu.memory_space<vmem>>, %arg2: memref<9x1x512xf32, #tpu.memory_space<vmem>>, %arg3: memref<2x1x512xf32, #tpu.memory_space<vmem>>, %arg4: memref<8x72xbf16, #tpu.memory_space<vmem>>, %arg5: memref<8x1xf32, #tpu.memory_space<vmem>>, %arg6: memref<8x72xbf16, #tpu.memory_space<vmem>>, %arg7: memref<8x1xf32, #tpu.memory_space<vmem>>, %arg8: memref<8x1xf32, #tpu.memory_space<vmem>>, %arg9: memref<1x1xf32, #tpu.memory_space<vmem>>, %arg10: memref<8x1xf32, #tpu.memory_space<vmem>>, %arg11: memref<8x1xf32, #tpu.memory_space<vmem>>, %arg12: memref<1x8xf32, #tpu.memory_space<vmem>>, %arg13: memref<1x1xf32, #tpu.memory_space<vmem>>, %arg14: memref<1x1xf32, #tpu.memory_space<vmem>>, %arg15: memref<1x1xf32, #tpu.memory_space<vmem>>, %arg16: memref<8x512xf32, #tpu.memory_space<vmem>>) attributes {dimension_semantics = [#tpu.dimension_semantics<parallel>], iteration_bounds = array<i64: 2>, scalar_prefetch = 0 : i64, scratch_operands = 0 : i64, tpu.core_type = #tpu.core_type<tc>, window_params = [{transform_indices = @transform_0, window_bounds = array<i64: 8, 512>}, {pipeline_mode = #tpu.pipeline_mode<synchronous>, transform_indices = @transform_1, window_bounds = array<i64: 9, 1, 512>}, {pipeline_mode = #tpu.pipeline_mode<synchronous>, transform_indices = @transform_2, window_bounds = array<i64: 2, 1, 512>}, {pipeline_mode = #tpu.pipeline_mode<synchronous>, transform_indices = @transform_3, window_bounds = array<i64: 8, 72>}, {pipeline_mode = #tpu.pipeline_mode<synchronous>, transform_indices = @transform_4, window_bounds = array<i64: 8, 1>}, {pipeline_mode = #tpu.pipeline_mode<synchronous>, transform_indices = @transform_5, window_bounds = array<i64: 8, 72>}, {pipeline_mode = #tpu.pipeline_mode<synchronous>, transform_indices = @transform_6, window_bounds = array<i64: 8, 1>}, {pipeline_mode = #tpu.pipeline_mode<synchronous>, transform_indices = @transform_7, window_bounds = array<i64: 8, 1>}, {pipeline_mode = #tpu.pipeline_mode<synchronous>, transform_indices = @transform_8, window_bounds = array<i64: 1, 1>}, {pipeline_mode = #tpu.pipeline_mode<synchronous>, transform_indices = @transform_9, window_bounds = array<i64: 8, 1>}, {pipeline_mode = #tpu.pipeline_mode<synchronous>, transform_indices = @transform_10, window_bounds = array<i64: 8, 1>}, {pipeline_mode = #tpu.pipeline_mode<synchronous>, transform_indices = @transform_11, window_bounds = array<i64: 1, 8>}, {pipeline_mode = #tpu.pipeline_mode<synchronous>, transform_indices = @transform_12, window_bounds = array<i64: 1, 1>}, {pipeline_mode = #tpu.pipeline_mode<synchronous>, transform_indices = @transform_13, window_bounds = array<i64: 1, 1>}, {pipeline_mode = #tpu.pipeline_mode<synchronous>, transform_indices = @transform_14, window_bounds = array<i64: 1, 1>}, {transform_indices = @transform_15, window_bounds = array<i64: 8, 512>}]} {
    %c0 = arith.constant 0 : index
    %c0_0 = arith.constant 0 : index
    %0 = vector.load %arg1[%c0, %c0_0] : memref<8x512xf32, #tpu.memory_space<vmem>>, vector<8x512xf32>
    %c17_i32 = arith.constant 17 : i32
    %1 = tpu.dynamic_rotate %0 by %c17_i32 dim 1 : vector<8x512xf32>, i32 -> vector<8x512xf32>
    %c0_1 = arith.constant 0 : index
    %c0_2 = arith.constant 0 : index
    %c0_3 = arith.constant 0 : index
    %2 = vector.load %arg2[%c0_1, %c0_2, %c0_3] : memref<9x1x512xf32, #tpu.memory_space<vmem>>, vector<1x1x512xf32>
    %3 = vector.shape_cast %2 : vector<1x1x512xf32> to vector<1x512xf32>
    %4 = vector.broadcast %3 : vector<1x512xf32> to vector<8x512xf32>
    %5 = arith.mulf %1, %4 : vector<8x512xf32>
    %c16_i32 = arith.constant 16 : i32
    %6 = tpu.dynamic_rotate %0 by %c16_i32 dim 1 : vector<8x512xf32>, i32 -> vector<8x512xf32>
    %c1 = arith.constant 1 : index
    %c0_4 = arith.constant 0 : index
    %c0_5 = arith.constant 0 : index
    %7 = vector.load %arg2[%c1, %c0_4, %c0_5] : memref<9x1x512xf32, #tpu.memory_space<vmem>>, vector<1x1x512xf32>
    %8 = vector.shape_cast %7 : vector<1x1x512xf32> to vector<1x512xf32>
    %9 = vector.broadcast %8 : vector<1x512xf32> to vector<8x512xf32>
    %10 = arith.mulf %6, %9 : vector<8x512xf32>
    %c15_i32 = arith.constant 15 : i32
    %11 = tpu.dynamic_rotate %0 by %c15_i32 dim 1 : vector<8x512xf32>, i32 -> vector<8x512xf32>
    %c2 = arith.constant 2 : index
    %c0_6 = arith.constant 0 : index
    %c0_7 = arith.constant 0 : index
    %12 = vector.load %arg2[%c2, %c0_6, %c0_7] : memref<9x1x512xf32, #tpu.memory_space<vmem>>, vector<1x1x512xf32>
    %13 = vector.shape_cast %12 : vector<1x1x512xf32> to vector<1x512xf32>
    %14 = vector.broadcast %13 : vector<1x512xf32> to vector<8x512xf32>
    %15 = arith.mulf %11, %14 : vector<8x512xf32>
    %c1_i32 = arith.constant 1 : i32
    %16 = tpu.dynamic_rotate %0 by %c1_i32 dim 1 : vector<8x512xf32>, i32 -> vector<8x512xf32>
    %c3 = arith.constant 3 : index
    %c0_8 = arith.constant 0 : index
    %c0_9 = arith.constant 0 : index
    %17 = vector.load %arg2[%c3, %c0_8, %c0_9] : memref<9x1x512xf32, #tpu.memory_space<vmem>>, vector<1x1x512xf32>
    %18 = vector.shape_cast %17 : vector<1x1x512xf32> to vector<1x512xf32>
    %19 = vector.broadcast %18 : vector<1x512xf32> to vector<8x512xf32>
    %20 = arith.mulf %16, %19 : vector<8x512xf32>
    %c511_i32 = arith.constant 511 : i32
    %21 = tpu.dynamic_rotate %0 by %c511_i32 dim 1 : vector<8x512xf32>, i32 -> vector<8x512xf32>
    %c5 = arith.constant 5 : index
    %c0_10 = arith.constant 0 : index
    %c0_11 = arith.constant 0 : index
    %22 = vector.load %arg2[%c5, %c0_10, %c0_11] : memref<9x1x512xf32, #tpu.memory_space<vmem>>, vector<1x1x512xf32>
    %23 = vector.shape_cast %22 : vector<1x1x512xf32> to vector<1x512xf32>
    %24 = vector.broadcast %23 : vector<1x512xf32> to vector<8x512xf32>
    %25 = arith.mulf %21, %24 : vector<8x512xf32>
    %c497_i32 = arith.constant 497 : i32
    %26 = tpu.dynamic_rotate %0 by %c497_i32 dim 1 : vector<8x512xf32>, i32 -> vector<8x512xf32>
    %c6 = arith.constant 6 : index
    %c0_12 = arith.constant 0 : index
    %c0_13 = arith.constant 0 : index
    %27 = vector.load %arg2[%c6, %c0_12, %c0_13] : memref<9x1x512xf32, #tpu.memory_space<vmem>>, vector<1x1x512xf32>
    %28 = vector.shape_cast %27 : vector<1x1x512xf32> to vector<1x512xf32>
    %29 = vector.broadcast %28 : vector<1x512xf32> to vector<8x512xf32>
    %30 = arith.mulf %26, %29 : vector<8x512xf32>
    %c496_i32 = arith.constant 496 : i32
    %31 = tpu.dynamic_rotate %0 by %c496_i32 dim 1 : vector<8x512xf32>, i32 -> vector<8x512xf32>
    %c7 = arith.constant 7 : index
    %c0_14 = arith.constant 0 : index
    %c0_15 = arith.constant 0 : index
    %32 = vector.load %arg2[%c7, %c0_14, %c0_15] : memref<9x1x512xf32, #tpu.memory_space<vmem>>, vector<1x1x512xf32>
    %33 = vector.shape_cast %32 : vector<1x1x512xf32> to vector<1x512xf32>
    %34 = vector.broadcast %33 : vector<1x512xf32> to vector<8x512xf32>
    %35 = arith.mulf %31, %34 : vector<8x512xf32>
    %c495_i32 = arith.constant 495 : i32
    %36 = tpu.dynamic_rotate %0 by %c495_i32 dim 1 : vector<8x512xf32>, i32 -> vector<8x512xf32>
    %c8 = arith.constant 8 : index
    %c0_16 = arith.constant 0 : index
    %c0_17 = arith.constant 0 : index
    %37 = vector.load %arg2[%c8, %c0_16, %c0_17] : memref<9x1x512xf32, #tpu.memory_space<vmem>>, vector<1x1x512xf32>
    %38 = vector.shape_cast %37 : vector<1x1x512xf32> to vector<1x512xf32>
    %39 = vector.broadcast %38 : vector<1x512xf32> to vector<8x512xf32>
    %40 = arith.mulf %36, %39 : vector<8x512xf32>
    %41 = tpu.concatenate %5, %10, %15, %20, %0, %25, %30, %35, %40 in 0 : vector<8x512xf32>, vector<8x512xf32>, vector<8x512xf32>, vector<8x512xf32>, vector<8x512xf32>, vector<8x512xf32>, vector<8x512xf32>, vector<8x512xf32>, vector<8x512xf32> -> vector<72x512xf32>
    %42 = arith.truncf %41 : vector<72x512xf32> to vector<72x512xbf16>
    %c0_18 = arith.constant 0 : index
    %c0_19 = arith.constant 0 : index
    %43 = vector.load %arg4[%c0_18, %c0_19] : memref<8x72xbf16, #tpu.memory_space<vmem>>, vector<8x72xbf16>
    %cst = arith.constant dense<0.000000e+00> : vector<8x512xf32>
    %44 = tpu.matmul %43, %42, %cst {dimension_numbers = #tpu.dot_dimension_numbers<[1], [0], [0], [1], [0, 0, 1, 1], [], []>} : vector<8x72xbf16>, vector<72x512xbf16>, vector<8x512xf32> -> vector<8x512xf32>
    %c0_20 = arith.constant 0 : index
    %c0_21 = arith.constant 0 : index
    %45 = vector.load %arg5[%c0_20, %c0_21] : memref<8x1xf32, #tpu.memory_space<vmem>>, vector<8x1xf32>
    %46 = vector.broadcast %45 : vector<8x1xf32> to vector<8x512xf32>
    %47 = arith.addf %44, %46 : vector<8x512xf32>
    %cst_22 = arith.constant 0.000000e+00 : f32
    %48 = vector.broadcast %cst_22 : f32 to vector<8x512xf32>
    %49 = arith.maximumf %47, %48 : vector<8x512xf32>
    %50 = arith.addf %0, %49 : vector<8x512xf32>
    %c17_i32_23 = arith.constant 17 : i32
    %51 = tpu.dynamic_rotate %50 by %c17_i32_23 dim 1 : vector<8x512xf32>, i32 -> vector<8x512xf32>
    %c0_24 = arith.constant 0 : index
    %c0_25 = arith.constant 0 : index
    %c0_26 = arith.constant 0 : index
    %52 = vector.load %arg2[%c0_24, %c0_25, %c0_26] : memref<9x1x512xf32, #tpu.memory_space<vmem>>, vector<1x1x512xf32>
    %53 = vector.shape_cast %52 : vector<1x1x512xf32> to vector<1x512xf32>
    %54 = vector.broadcast %53 : vector<1x512xf32> to vector<8x512xf32>
    %55 = arith.mulf %51, %54 : vector<8x512xf32>
    %c16_i32_27 = arith.constant 16 : i32
    %56 = tpu.dynamic_rotate %50 by %c16_i32_27 dim 1 : vector<8x512xf32>, i32 -> vector<8x512xf32>
    %c1_28 = arith.constant 1 : index
    %c0_29 = arith.constant 0 : index
    %c0_30 = arith.constant 0 : index
    %57 = vector.load %arg2[%c1_28, %c0_29, %c0_30] : memref<9x1x512xf32, #tpu.memory_space<vmem>>, vector<1x1x512xf32>
    %58 = vector.shape_cast %57 : vector<1x1x512xf32> to vector<1x512xf32>
    %59 = vector.broadcast %58 : vector<1x512xf32> to vector<8x512xf32>
    %60 = arith.mulf %56, %59 : vector<8x512xf32>
    %c15_i32_31 = arith.constant 15 : i32
    %61 = tpu.dynamic_rotate %50 by %c15_i32_31 dim 1 : vector<8x512xf32>, i32 -> vector<8x512xf32>
    %c2_32 = arith.constant 2 : index
    %c0_33 = arith.constant 0 : index
    %c0_34 = arith.constant 0 : index
    %62 = vector.load %arg2[%c2_32, %c0_33, %c0_34] : memref<9x1x512xf32, #tpu.memory_space<vmem>>, vector<1x1x512xf32>
    %63 = vector.shape_cast %62 : vector<1x1x512xf32> to vector<1x512xf32>
    %64 = vector.broadcast %63 : vector<1x512xf32> to vector<8x512xf32>
    %65 = arith.mulf %61, %64 : vector<8x512xf32>
    %c1_i32_35 = arith.constant 1 : i32
    %66 = tpu.dynamic_rotate %50 by %c1_i32_35 dim 1 : vector<8x512xf32>, i32 -> vector<8x512xf32>
    %c3_36 = arith.constant 3 : index
    %c0_37 = arith.constant 0 : index
    %c0_38 = arith.constant 0 : index
    %67 = vector.load %arg2[%c3_36, %c0_37, %c0_38] : memref<9x1x512xf32, #tpu.memory_space<vmem>>, vector<1x1x512xf32>
    %68 = vector.shape_cast %67 : vector<1x1x512xf32> to vector<1x512xf32>
    %69 = vector.broadcast %68 : vector<1x512xf32> to vector<8x512xf32>
    %70 = arith.mulf %66, %69 : vector<8x512xf32>
    %c511_i32_39 = arith.constant 511 : i32
    %71 = tpu.dynamic_rotate %50 by %c511_i32_39 dim 1 : vector<8x512xf32>, i32 -> vector<8x512xf32>
    %c5_40 = arith.constant 5 : index
    %c0_41 = arith.constant 0 : index
    %c0_42 = arith.constant 0 : index
    %72 = vector.load %arg2[%c5_40, %c0_41, %c0_42] : memref<9x1x512xf32, #tpu.memory_space<vmem>>, vector<1x1x512xf32>
    %73 = vector.shape_cast %72 : vector<1x1x512xf32> to vector<1x512xf32>
    %74 = vector.broadcast %73 : vector<1x512xf32> to vector<8x512xf32>
    %75 = arith.mulf %71, %74 : vector<8x512xf32>
    %c497_i32_43 = arith.constant 497 : i32
    %76 = tpu.dynamic_rotate %50 by %c497_i32_43 dim 1 : vector<8x512xf32>, i32 -> vector<8x512xf32>
    %c6_44 = arith.constant 6 : index
    %c0_45 = arith.constant 0 : index
    %c0_46 = arith.constant 0 : index
    %77 = vector.load %arg2[%c6_44, %c0_45, %c0_46] : memref<9x1x512xf32, #tpu.memory_space<vmem>>, vector<1x1x512xf32>
    %78 = vector.shape_cast %77 : vector<1x1x512xf32> to vector<1x512xf32>
    %79 = vector.broadcast %78 : vector<1x512xf32> to vector<8x512xf32>
    %80 = arith.mulf %76, %79 : vector<8x512xf32>
    %c496_i32_47 = arith.constant 496 : i32
    %81 = tpu.dynamic_rotate %50 by %c496_i32_47 dim 1 : vector<8x512xf32>, i32 -> vector<8x512xf32>
    %c7_48 = arith.constant 7 : index
    %c0_49 = arith.constant 0 : index
    %c0_50 = arith.constant 0 : index
    %82 = vector.load %arg2[%c7_48, %c0_49, %c0_50] : memref<9x1x512xf32, #tpu.memory_space<vmem>>, vector<1x1x512xf32>
    %83 = vector.shape_cast %82 : vector<1x1x512xf32> to vector<1x512xf32>
    %84 = vector.broadcast %83 : vector<1x512xf32> to vector<8x512xf32>
    %85 = arith.mulf %81, %84 : vector<8x512xf32>
    %c495_i32_51 = arith.constant 495 : i32
    %86 = tpu.dynamic_rotate %50 by %c495_i32_51 dim 1 : vector<8x512xf32>, i32 -> vector<8x512xf32>
    %c8_52 = arith.constant 8 : index
    %c0_53 = arith.constant 0 : index
    %c0_54 = arith.constant 0 : index
    %87 = vector.load %arg2[%c8_52, %c0_53, %c0_54] : memref<9x1x512xf32, #tpu.memory_space<vmem>>, vector<1x1x512xf32>
    %88 = vector.shape_cast %87 : vector<1x1x512xf32> to vector<1x512xf32>
    %89 = vector.broadcast %88 : vector<1x512xf32> to vector<8x512xf32>
    %90 = arith.mulf %86, %89 : vector<8x512xf32>
    %91 = tpu.concatenate %55, %60, %65, %70, %50, %75, %80, %85, %90 in 0 : vector<8x512xf32>, vector<8x512xf32>, vector<8x512xf32>, vector<8x512xf32>, vector<8x512xf32>, vector<8x512xf32>, vector<8x512xf32>, vector<8x512xf32>, vector<8x512xf32> -> vector<72x512xf32>
    %92 = arith.truncf %91 : vector<72x512xf32> to vector<72x512xbf16>
    %c0_55 = arith.constant 0 : index
    %c0_56 = arith.constant 0 : index
    %93 = vector.load %arg6[%c0_55, %c0_56] : memref<8x72xbf16, #tpu.memory_space<vmem>>, vector<8x72xbf16>
    %cst_57 = arith.constant dense<0.000000e+00> : vector<8x512xf32>
    %94 = tpu.matmul %93, %92, %cst_57 {dimension_numbers = #tpu.dot_dimension_numbers<[1], [0], [0], [1], [0, 0, 1, 1], [], []>} : vector<8x72xbf16>, vector<72x512xbf16>, vector<8x512xf32> -> vector<8x512xf32>
    %c0_58 = arith.constant 0 : index
    %c0_59 = arith.constant 0 : index
    %95 = vector.load %arg7[%c0_58, %c0_59] : memref<8x1xf32, #tpu.memory_space<vmem>>, vector<8x1xf32>
    %96 = vector.broadcast %95 : vector<8x1xf32> to vector<8x512xf32>
    %97 = arith.addf %94, %96 : vector<8x512xf32>
    %c0_60 = arith.constant 0 : index
    %c0_61 = arith.constant 0 : index
    %c0_62 = arith.constant 0 : index
    %98 = vector.load %arg3[%c0_60, %c0_61, %c0_62] : memref<2x1x512xf32, #tpu.memory_space<vmem>>, vector<1x1x512xf32>
    %99 = vector.shape_cast %98 : vector<1x1x512xf32> to vector<1x512xf32>
    %100 = vector.broadcast %99 : vector<1x512xf32> to vector<8x512xf32>
    %101 = arith.mulf %97, %100 : vector<8x512xf32>
    %cst_63 = arith.constant dense<0.000000e+00> : vector<8xf32>
    %102 = vector.multi_reduction <add>, %101, %cst_63 [1] : vector<8x512xf32> to vector<8xf32>
    %103 = vector.shape_cast %102 : vector<8xf32> to vector<8x1xf32>
    %cst_64 = arith.constant 3.906250e-03 : f32
    %104 = vector.broadcast %cst_64 : f32 to vector<8x1xf32>
    %105 = arith.mulf %103, %104 : vector<8x1xf32>
    %c0_65 = arith.constant 0 : index
    %c0_66 = arith.constant 0 : index
    %106 = vector.load %arg8[%c0_65, %c0_66] : memref<8x1xf32, #tpu.memory_space<vmem>>, vector<8x1xf32>
    %107 = arith.mulf %106, %105 : vector<8x1xf32>
    %cst_67 = arith.constant dense<0.000000e+00> : vector<1xf32>
    %108 = vector.multi_reduction <add>, %107, %cst_67 [0] : vector<8x1xf32> to vector<1xf32>
    %109 = vector.shape_cast %108 : vector<1xf32> to vector<1x1xf32>
    %c0_68 = arith.constant 0 : index
    %c0_69 = arith.constant 0 : index
    %110 = vector.load %arg9[%c0_68, %c0_69] : memref<1x1xf32, #tpu.memory_space<vmem>>, vector<1x1xf32>
    %111 = arith.addf %109, %110 : vector<1x1xf32>
    %cst_70 = arith.constant 0.000000e+00 : f32
    %112 = vector.broadcast %cst_70 : f32 to vector<1x1xf32>
    %113 = arith.maximumf %111, %112 : vector<1x1xf32>
    %c0_71 = arith.constant 0 : index
    %c0_72 = arith.constant 0 : index
    %114 = vector.load %arg10[%c0_71, %c0_72] : memref<8x1xf32, #tpu.memory_space<vmem>>, vector<8x1xf32>
    %115 = vector.broadcast %113 : vector<1x1xf32> to vector<8x1xf32>
    %116 = arith.mulf %114, %115 : vector<8x1xf32>
    %cst_73 = arith.constant dense<0.000000e+00> : vector<8xf32>
    %117 = vector.multi_reduction <add>, %116, %cst_73 [1] : vector<8x1xf32> to vector<8xf32>
    %118 = vector.shape_cast %117 : vector<8xf32> to vector<8x1xf32>
    %c0_74 = arith.constant 0 : index
    %c0_75 = arith.constant 0 : index
    %119 = vector.load %arg11[%c0_74, %c0_75] : memref<8x1xf32, #tpu.memory_space<vmem>>, vector<8x1xf32>
    %120 = arith.addf %118, %119 : vector<8x1xf32>
    %121 = arith.negf %120 : vector<8x1xf32>
    %122 = math.exp %121 : vector<8x1xf32>
    %cst_76 = arith.constant 1.000000e+00 : f32
    %123 = vector.broadcast %cst_76 : f32 to vector<8x1xf32>
    %124 = arith.addf %123, %122 : vector<8x1xf32>
    %125 = arith.divf %123, %124 : vector<8x1xf32>
    %126 = vector.broadcast %125 : vector<8x1xf32> to vector<8x512xf32>
    %127 = vector.broadcast %99 : vector<1x512xf32> to vector<8x512xf32>
    %128 = arith.mulf %126, %127 : vector<8x512xf32>
    %c1_77 = arith.constant 1 : index
    %c0_78 = arith.constant 0 : index
    %c0_79 = arith.constant 0 : index
    %129 = vector.load %arg3[%c1_77, %c0_78, %c0_79] : memref<2x1x512xf32, #tpu.memory_space<vmem>>, vector<1x1x512xf32>
    %130 = vector.shape_cast %129 : vector<1x1x512xf32> to vector<1x512xf32>
    %131 = vector.broadcast %130 : vector<1x512xf32> to vector<8x512xf32>
    %132 = arith.mulf %97, %131 : vector<8x512xf32>
    %cst_80 = arith.constant dense<0.000000e+00> : vector<8xf32>
    %133 = vector.multi_reduction <add>, %132, %cst_80 [1] : vector<8x512xf32> to vector<8xf32>
    %134 = vector.shape_cast %133 : vector<8xf32> to vector<8x1xf32>
    %cst_81 = arith.constant 3.906250e-03 : f32
    %135 = vector.broadcast %cst_81 : f32 to vector<8x1xf32>
    %136 = arith.mulf %134, %135 : vector<8x1xf32>
    %c0_82 = arith.constant 0 : index
    %c0_83 = arith.constant 0 : index
    %137 = vector.load %arg8[%c0_82, %c0_83] : memref<8x1xf32, #tpu.memory_space<vmem>>, vector<8x1xf32>
    %138 = arith.mulf %137, %136 : vector<8x1xf32>
    %cst_84 = arith.constant dense<0.000000e+00> : vector<1xf32>
    %139 = vector.multi_reduction <add>, %138, %cst_84 [0] : vector<8x1xf32> to vector<1xf32>
    %140 = vector.shape_cast %139 : vector<1xf32> to vector<1x1xf32>
    %c0_85 = arith.constant 0 : index
    %c0_86 = arith.constant 0 : index
    %141 = vector.load %arg9[%c0_85, %c0_86] : memref<1x1xf32, #tpu.memory_space<vmem>>, vector<1x1xf32>
    %142 = arith.addf %140, %141 : vector<1x1xf32>
    %cst_87 = arith.constant 0.000000e+00 : f32
    %143 = vector.broadcast %cst_87 : f32 to vector<1x1xf32>
    %144 = arith.maximumf %142, %143 : vector<1x1xf32>
    %c0_88 = arith.constant 0 : index
    %c0_89 = arith.constant 0 : index
    %145 = vector.load %arg10[%c0_88, %c0_89] : memref<8x1xf32, #tpu.memory_space<vmem>>, vector<8x1xf32>
    %146 = vector.broadcast %144 : vector<1x1xf32> to vector<8x1xf32>
    %147 = arith.mulf %145, %146 : vector<8x1xf32>
    %cst_90 = arith.constant dense<0.000000e+00> : vector<8xf32>
    %148 = vector.multi_reduction <add>, %147, %cst_90 [1] : vector<8x1xf32> to vector<8xf32>
    %149 = vector.shape_cast %148 : vector<8xf32> to vector<8x1xf32>
    %c0_91 = arith.constant 0 : index
    %c0_92 = arith.constant 0 : index
    %150 = vector.load %arg11[%c0_91, %c0_92] : memref<8x1xf32, #tpu.memory_space<vmem>>, vector<8x1xf32>
    %151 = arith.addf %149, %150 : vector<8x1xf32>
    %152 = arith.negf %151 : vector<8x1xf32>
    %153 = math.exp %152 : vector<8x1xf32>
    %cst_93 = arith.constant 1.000000e+00 : f32
    %154 = vector.broadcast %cst_93 : f32 to vector<8x1xf32>
    %155 = arith.addf %154, %153 : vector<8x1xf32>
    %156 = arith.divf %154, %155 : vector<8x1xf32>
    %157 = vector.broadcast %156 : vector<8x1xf32> to vector<8x512xf32>
    %158 = vector.broadcast %130 : vector<1x512xf32> to vector<8x512xf32>
    %159 = arith.mulf %157, %158 : vector<8x512xf32>
    %160 = arith.addf %128, %159 : vector<8x512xf32>
    %161 = arith.mulf %97, %160 : vector<8x512xf32>
    %c0_94 = arith.constant 0 : index
    %c0_95 = arith.constant 0 : index
    %162 = vector.load %arg12[%c0_94, %c0_95] : memref<1x8xf32, #tpu.memory_space<vmem>>, vector<1x8xf32>
    %cst_96 = arith.constant dense<0.000000e+00> : vector<1x512xf32>
    %163 = tpu.matmul %162, %161, %cst_96 {dimension_numbers = #tpu.dot_dimension_numbers<[1], [0], [0], [1], [0, 0, 1, 1], [], []>} : vector<1x8xf32>, vector<8x512xf32>, vector<1x512xf32> -> vector<1x512xf32>
    %c0_97 = arith.constant 0 : index
    %c0_98 = arith.constant 0 : index
    %164 = vector.load %arg13[%c0_97, %c0_98] : memref<1x1xf32, #tpu.memory_space<vmem>>, vector<1x1xf32>
    %165 = vector.broadcast %164 : vector<1x1xf32> to vector<1x512xf32>
    %166 = arith.addf %163, %165 : vector<1x512xf32>
    %cst_99 = arith.constant 0.000000e+00 : f32
    %167 = vector.broadcast %cst_99 : f32 to vector<1x512xf32>
    %168 = arith.maximumf %166, %167 : vector<1x512xf32>
    %c0_100 = arith.constant 0 : index
    %c0_101 = arith.constant 0 : index
    %169 = vector.load %arg14[%c0_100, %c0_101] : memref<1x1xf32, #tpu.memory_space<vmem>>, vector<1x1xf32>
    %170 = vector.broadcast %169 : vector<1x1xf32> to vector<1x512xf32>
    %171 = arith.mulf %170, %168 : vector<1x512xf32>
    %cst_102 = arith.constant dense<0.000000e+00> : vector<512xf32>
    %172 = vector.multi_reduction <add>, %171, %cst_102 [0] : vector<1x512xf32> to vector<512xf32>
    %173 = vector.shape_cast %172 : vector<512xf32> to vector<1x512xf32>
    %c0_103 = arith.constant 0 : index
    %c0_104 = arith.constant 0 : index
    %174 = vector.load %arg15[%c0_103, %c0_104] : memref<1x1xf32, #tpu.memory_space<vmem>>, vector<1x1xf32>
    %175 = vector.broadcast %174 : vector<1x1xf32> to vector<1x512xf32>
    %176 = arith.addf %173, %175 : vector<1x512xf32>
    %177 = arith.negf %176 : vector<1x512xf32>
    %178 = math.exp %177 : vector<1x512xf32>
    %cst_105 = arith.constant 1.000000e+00 : f32
    %179 = vector.broadcast %cst_105 : f32 to vector<1x512xf32>
    %180 = arith.addf %179, %178 : vector<1x512xf32>
    %181 = arith.divf %179, %180 : vector<1x512xf32>
    %182 = vector.broadcast %181 : vector<1x512xf32> to vector<8x512xf32>
    %183 = arith.mulf %161, %182 : vector<8x512xf32>
    %184 = arith.addf %0, %183 : vector<8x512xf32>
    %c0_106 = arith.constant 0 : index
    %c0_107 = arith.constant 0 : index
    %185 = vector.load %arg16[%c0_106, %c0_107] : memref<8x512xf32, #tpu.memory_space<vmem>>, vector<8x512xf32>
    tpu.vector_store %arg16[%c0_106, %c0_107], %184 {strides = array<i32>} : memref<8x512xf32, #tpu.memory_space<vmem>>, vector<8x512xf32>,
    return
  }
  func.func @transform_0(%arg0: i32) -> (i32, i32) {
    %c0_i32 = arith.constant 0 : i32
    %c0_i32_0 = arith.constant 0 : i32
    return %c0_i32, %arg0 : i32, i32
  }
  func.func @transform_1(%arg0: i32) -> (i32, i32, i32) {
    %c0_i32 = arith.constant 0 : i32
    %c0_i32_0 = arith.constant 0 : i32
    %c0_i32_1 = arith.constant 0 : i32
    %c0_i32_2 = arith.constant 0 : i32
    return %c0_i32, %c0_i32_0, %c0_i32_1 : i32, i32, i32
  }
  func.func @transform_2(%arg0: i32) -> (i32, i32, i32) {
    %c0_i32 = arith.constant 0 : i32
    %c0_i32_0 = arith.constant 0 : i32
    %c0_i32_1 = arith.constant 0 : i32
    %c0_i32_2 = arith.constant 0 : i32
    return %c0_i32, %c0_i32_0, %c0_i32_1 : i32, i32, i32
  }
  func.func @transform_3(%arg0: i32) -> (i32, i32) {
    %c0_i32 = arith.constant 0 : i32
    %c0_i32_0 = arith.constant 0 : i32
    %c0_i32_1 = arith.constant 0 : i32
    return %c0_i32, %c0_i32_0 : i32, i32
  }
  func.func @transform_4(%arg0: i32) -> (i32, i32) {
    %c0_i32 = arith.constant 0 : i32
    %c0_i32_0 = arith.constant 0 : i32
    %c0_i32_1 = arith.constant 0 : i32
    return %c0_i32, %c0_i32_0 : i32, i32
  }
  func.func @transform_5(%arg0: i32) -> (i32, i32) {
    %c0_i32 = arith.constant 0 : i32
    %c0_i32_0 = arith.constant 0 : i32
    %c0_i32_1 = arith.constant 0 : i32
    return %c0_i32, %c0_i32_0 : i32, i32
  }
  func.func @transform_6(%arg0: i32) -> (i32, i32) {
    %c0_i32 = arith.constant 0 : i32
    %c0_i32_0 = arith.constant 0 : i32
    %c0_i32_1 = arith.constant 0 : i32
    return %c0_i32, %c0_i32_0 : i32, i32
  }
  func.func @transform_7(%arg0: i32) -> (i32, i32) {
    %c0_i32 = arith.constant 0 : i32
    %c0_i32_0 = arith.constant 0 : i32
    %c0_i32_1 = arith.constant 0 : i32
    return %c0_i32, %c0_i32_0 : i32, i32
  }
  func.func @transform_8(%arg0: i32) -> (i32, i32) {
    %c0_i32 = arith.constant 0 : i32
    %c0_i32_0 = arith.constant 0 : i32
    %c0_i32_1 = arith.constant 0 : i32
    return %c0_i32, %c0_i32_0 : i32, i32
  }
  func.func @transform_9(%arg0: i32) -> (i32, i32) {
    %c0_i32 = arith.constant 0 : i32
    %c0_i32_0 = arith.constant 0 : i32
    %c0_i32_1 = arith.constant 0 : i32
    return %c0_i32, %c0_i32_0 : i32, i32
  }
  func.func @transform_10(%arg0: i32) -> (i32, i32) {
    %c0_i32 = arith.constant 0 : i32
    %c0_i32_0 = arith.constant 0 : i32
    %c0_i32_1 = arith.constant 0 : i32
    return %c0_i32, %c0_i32_0 : i32, i32
  }
  func.func @transform_11(%arg0: i32) -> (i32, i32) {
    %c0_i32 = arith.constant 0 : i32
    %c0_i32_0 = arith.constant 0 : i32
    %c0_i32_1 = arith.constant 0 : i32
    return %c0_i32, %c0_i32_0 : i32, i32
  }
  func.func @transform_12(%arg0: i32) -> (i32, i32) {
    %c0_i32 = arith.constant 0 : i32
    %c0_i32_0 = arith.constant 0 : i32
    %c0_i32_1 = arith.constant 0 : i32
    return %c0_i32, %c0_i32_0 : i32, i32
  }
  func.func @transform_13(%arg0: i32) -> (i32, i32) {
    %c0_i32 = arith.constant 0 : i32
    %c0_i32_0 = arith.constant 0 : i32
    %c0_i32_1 = arith.constant 0 : i32
    return %c0_i32, %c0_i32_0 : i32, i32
  }
  func.func @transform_14(%arg0: i32) -> (i32, i32) {
    %c0_i32 = arith.constant 0 : i32
    %c0_i32_0 = arith.constant 0 : i32
    %c0_i32_1 = arith.constant 0 : i32
    return %c0_i32, %c0_i32_0 : i32, i32
  }
  func.func @transform_15(%arg0: i32) -> (i32, i32) {
    %c0_i32 = arith.constant 0 : i32
    %c0_i32_0 = arith.constant 0 : i32
    return %c0_i32, %arg0 : i32, i32
  }
}

</mosaic_0001>

<llo_original>
// kernel: tpu_custom_call.1
$region0: #{tpu_custom_call.1}
  #allocation0 [shape = 'u32[]', space=smem, size = 0x4, offset = 0x4, fixed_abs, tag = 'smem constant byte address 0x4 - core index']
  #allocation1 [shape = 'u32[144,128]{1,0:T(1,128)}', space=vmem, size = 0x12000, scoped, tag = 'internal scratch']
  #allocation2 [shape = 'f32[1,1]{1,0:T(1,128)S(1)}', space=vmem, size = 0x200, scoped, tag = 'scoped memory for tpu_custom_call.1']
  #allocation3 [shape = 'f32[1,1]{1,0:T(1,128)S(1)}', space=vmem, size = 0x200, scoped, tag = 'scoped memory for tpu_custom_call.1']
  #allocation4 [shape = 'f32[1,1]{1,0:T(1,128)S(1)}', space=vmem, size = 0x200, scoped, tag = 'scoped memory for tpu_custom_call.1']
  #allocation5 [shape = 'f32[1,1]{1,0:T(1,128)S(1)}', space=vmem, size = 0x200, scoped, tag = 'scoped memory for tpu_custom_call.1']
  %s0 = inlined_call_operand.hbm [shape: f32[8,1024], index: 0, kind: input, shape index: {}]
  %s1 = inlined_call_operand.vmem [shape: f32[9,1,512], index: 1, kind: input, shape index: {}]
  %s2 = inlined_call_operand.vmem [shape: f32[2,1,512], index: 2, kind: input, shape index: {}]
  %s3 = inlined_call_operand.vmem [shape: bf16[8,72], index: 3, kind: input, shape index: {}]
  %s4 = inlined_call_operand.vmem [shape: f32[8,1], index: 4, kind: input, shape index: {}]
  %s5 = inlined_call_operand.vmem [shape: bf16[8,72], index: 5, kind: input, shape index: {}]
  %s6 = inlined_call_operand.vmem [shape: f32[8,1], index: 6, kind: input, shape index: {}]
  %s7 = inlined_call_operand.vmem [shape: f32[8,1], index: 7, kind: input, shape index: {}]
  %s8 = inlined_call_operand.<no memory space> [shape: f32[1,1], index: 8, kind: input, shape index: {}]
  %s9 = inlined_call_operand.vmem [shape: f32[8,1], index: 9, kind: input, shape index: {}]
  %s10 = inlined_call_operand.vmem [shape: f32[8,1], index: 10, kind: input, shape index: {}]
  %s11 = inlined_call_operand.vmem [shape: f32[1,8], index: 11, kind: input, shape index: {}]
  %s12 = inlined_call_operand.<no memory space> [shape: f32[1,1], index: 12, kind: input, shape index: {}]
  %s13 = inlined_call_operand.<no memory space> [shape: f32[1,1], index: 13, kind: input, shape index: {}]
  %s14 = inlined_call_operand.<no memory space> [shape: f32[1,1], index: 14, kind: input, shape index: {}]
  %s15 = inlined_call_operand.hbm [shape: f32[8,1024], index: 15, kind: output, shape index: {}]
  %s16 = sld [smem:[#allocation0]]
  $region97: #{tpu_custom_call.1} parent=0
    _
  %s18 = ssub.s32 1, %s16
  %s19 = scalar_select 0, %s18, %s16
  %v20 = vstv %s8
  %21 = vst [vmem:[#allocation2] sm:$0x1] %v20
  %v22 = vstv %s12
  %23 = vst [vmem:[#allocation3] sm:$0x1] %v22
  %v24 = vstv %s13
  %25 = vst [vmem:[#allocation4] sm:$0x1] %v24
  %v26 = vstv %s14
  %27 = vst [vmem:[#allocation5] sm:$0x1] %v26
  $region1: #{tpu_custom_call.1} parent=0
    #allocation6 [shape = 'u8[32768]{0}', space=vmem, size = 0x8000, scoped, tag = 'input window, operand 0']
    #allocation7 [shape = 's32[2]{0}', space=sflag, size = 0x8, scoped, tag = 'scoped memory for tpu_custom_call.1']
    #allocation8 [shape = 's32[2]{0}', space=sflag, size = 0x8, scoped, tag = 'scoped memory for tpu_custom_call.1']
    #allocation9 [shape = 'u8[32768]{0}', space=vmem, size = 0x8000, scoped, tag = 'output window, operand 0']
    %28 = vsyncpa [#allocation7], 0
    %s29 = scalar_lea.sflag [#allocation7], 1
    %30 = vsyncpa %s29, 0
    %31 = vsyncpa [#allocation8], 0
    %s32 = scalar_lea.sflag [#allocation8], 1
    %33 = vsyncpa %s32, 0
    loop: start=0, step=1, limit=4
    $region2: #{tpu_custom_call.1} parent=1 // loop_pre_header
      _
    $region3: #{tpu_custom_call.1} parent=1 // loop_header
      %s35 = sphi 0, %s39
      %p36 = scmp.ge.s32.totalorder %s35, 4
      %s45 = sphi 0, %s47
      %s48 = sphi 0, %s45
      %s49 = sphi 0, %s48
      %s65 = sphi 0, %s49
      %s69 = sphi 0, %s69
      %s71 = sphi 0, %s69
      %s72 = sphi 0, %s71
      %s86 = sphi 0, %s72
      %s90 = sphi 0, %s90
      %s92 = sphi 0, %s90
      %s93 = sphi 0, %s92
      %s107 = sphi 0, %s93
      %s111 = sphi 0, %s111
      %s113 = sphi 0, %s111
      %s114 = sphi 0, %s113
      %s128 = sphi 0, %s114
      %s132 = sphi 0, %s132
      %s134 = sphi 0, %s132
      %s135 = sphi 0, %s134
      %s149 = sphi 0, %s135
      %s153 = sphi 0, %s153
      %s155 = sphi 0, %s153
      %s156 = sphi 0, %s155
      %s170 = sphi 0, %s156
      %s174 = sphi 0, %s174
      %s176 = sphi 0, %s174
      %s177 = sphi 0, %s176
      %s191 = sphi 0, %s177
      %s195 = sphi 0, %s195
      %s197 = sphi 0, %s195
      %s198 = sphi 0, %s197
      %s212 = sphi 0, %s198
      %s216 = sphi 0, %s216
      %s218 = sphi 0, %s216
      %s219 = sphi 0, %s218
      %s233 = sphi 0, %s219
      %s237 = sphi 0, %s237
      %s239 = sphi 0, %s237
      %s240 = sphi 0, %s239
      %s254 = sphi 0, %s240
      %s258 = sphi 0, %s258
      %s260 = sphi 0, %s258
      %s261 = sphi 0, %s260
      %s275 = sphi 0, %s261
      %s279 = sphi 0, %s279
      %s281 = sphi 0, %s279
      %s282 = sphi 0, %s281
      %s296 = sphi 0, %s282
      %s300 = sphi 0, %s300
      %s302 = sphi 0, %s300
      %s303 = sphi 0, %s302
      %s317 = sphi 0, %s303
      %s321 = sphi 0, %s321
      %s323 = sphi 0, %s321
      %s324 = sphi 0, %s323
      %s338 = sphi 0, %s324
      %s342 = sphi 0, %s342
      %s344 = sphi 0, %s342
      %s345 = sphi 0, %s344
      %s359 = sphi 0, %s345
      %s365 = sphi 0, %s367
      %s368 = sphi 0, %s365
      %s369 = sphi 0, %s368
      %s385 = sphi 0, %s369
    $region4: #{tpu_custom_call.1} parent=1 // loop_header_branch
      %38 = sbr.rel (%p36) target = $region8
    $region5: #{tpu_custom_call.1} parent=1 // loop_body
      %s40 = ssub.s32 %s35, 1
      %s41 = ssub.s32 %s35, 2
      %s42 = sadd.s32 %s35, 1
      %s43 = ssub.s32 %s35, %s42
      %p44 = scmp.eq.s32.totalorder %s43, 0
      %s46 = sadd.s32 %s45, 1
      %s47 = scalar_select %p44, %s45, %s46
      %p50 = pneg %p44
      %p51 = scmp.eq.s32.totalorder %s35, 1
      %p52 = por %p50, %p51
      %p53 = scmp.ne.s32.totalorder %s45, %s48
      %p54 = scmp.eq.s32.totalorder %s35, 0
      %p55 = por %p53, %p54
      %p56 = scmp.ne.s32.totalorder %s45, %s48
      %p57 = scmp.eq.s32.totalorder %s40, 1
      %p58 = por %p56, %p57
      %p59 = scmp.ne.s32.totalorder %s48, %s49
      %p60 = scmp.eq.s32.totalorder %s40, 0
      %p61 = por %p59, %p60
      %p62 = scmp.ne.s32.totalorder %s48, %s49
      %p63 = scmp.eq.s32.totalorder %s41, 1
      %p64 = por %p62, %p63
      %p66 = scmp.ne.s32.totalorder %s49, %s65
      %p67 = scmp.eq.s32.totalorder %s41, 0
      %p68 = por %p66, %p67
      %s70 = sadd.s32 %s69, 1
      %p73 = scmp.eq.s32.totalorder %s35, 1
      %p74 = scmp.ne.s32.totalorder %s69, %s71
      %p75 = scmp.eq.s32.totalorder %s35, 0
      %p76 = por %p74, %p75
      %p77 = scmp.ne.s32.totalorder %s69, %s71
      %p78 = scmp.eq.s32.totalorder %s40, 1
      %p79 = por %p77, %p78
      %p80 = scmp.ne.s32.totalorder %s71, %s72
      %p81 = scmp.eq.s32.totalorder %s40, 0
      %p82 = por %p80, %p81
      %p83 = scmp.ne.s32.totalorder %s71, %s72
      %p84 = scmp.eq.s32.totalorder %s41, 1
      %p85 = por %p83, %p84
      %p87 = scmp.ne.s32.totalorder %s72, %s86
      %p88 = scmp.eq.s32.totalorder %s41, 0
      %p89 = por %p87, %p88
      %s91 = sadd.s32 %s90, 1
      %p94 = scmp.eq.s32.totalorder %s35, 1
      %p95 = scmp.ne.s32.totalorder %s90, %s92
      %p96 = scmp.eq.s32.totalorder %s35, 0
      %p97 = por %p95, %p96
      %p98 = scmp.ne.s32.totalorder %s90, %s92
      %p99 = scmp.eq.s32.totalorder %s40, 1
      %p100 = por %p98, %p99
      %p101 = scmp.ne.s32.totalorder %s92, %s93
      %p102 = scmp.eq.s32.totalorder %s40, 0
      %p103 = por %p101, %p102
      %p104 = scmp.ne.s32.totalorder %s92, %s93
      %p105 = scmp.eq.s32.totalorder %s41, 1
      %p106 = por %p104, %p105
      %p108 = scmp.ne.s32.totalorder %s93, %s107
      %p109 = scmp.eq.s32.totalorder %s41, 0
      %p110 = por %p108, %p109
      %s112 = sadd.s32 %s111, 1
      %p115 = scmp.eq.s32.totalorder %s35, 1
      %p116 = scmp.ne.s32.totalorder %s111, %s113
      %p117 = scmp.eq.s32.totalorder %s35, 0
      %p118 = por %p116, %p117
      %p119 = scmp.ne.s32.totalorder %s111, %s113
      %p120 = scmp.eq.s32.totalorder %s40, 1
      %p121 = por %p119, %p120
      %p122 = scmp.ne.s32.totalorder %s113, %s114
      %p123 = scmp.eq.s32.totalorder %s40, 0
      %p124 = por %p122, %p123
      %p125 = scmp.ne.s32.totalorder %s113, %s114
      %p126 = scmp.eq.s32.totalorder %s41, 1
      %p127 = por %p125, %p126
      %p129 = scmp.ne.s32.totalorder %s114, %s128
      %p130 = scmp.eq.s32.totalorder %s41, 0
      %p131 = por %p129, %p130
      %s133 = sadd.s32 %s132, 1
      %p136 = scmp.eq.s32.totalorder %s35, 1
      %p137 = scmp.ne.s32.totalorder %s132, %s134
      %p138 = scmp.eq.s32.totalorder %s35, 0
      %p139 = por %p137, %p138
      %p140 = scmp.ne.s32.totalorder %s132, %s134
      %p141 = scmp.eq.s32.totalorder %s40, 1
      %p142 = por %p140, %p141
      %p143 = scmp.ne.s32.totalorder %s134, %s135
      %p144 = scmp.eq.s32.totalorder %s40, 0
      %p145 = por %p143, %p144
      %p146 = scmp.ne.s32.totalorder %s134, %s135
      %p147 = scmp.eq.s32.totalorder %s41, 1
      %p148 = por %p146, %p147
      %p150 = scmp.ne.s32.totalorder %s135, %s149
      %p151 = scmp.eq.s32.totalorder %s41, 0
      %p152 = por %p150, %p151
      %s154 = sadd.s32 %s153, 1
      %p157 = scmp.eq.s32.totalorder %s35, 1
      %p158 = scmp.ne.s32.totalorder %s153, %s155
      %p159 = scmp.eq.s32.totalorder %s35, 0
      %p160 = por %p158, %p159
      %p161 = scmp.ne.s32.totalorder %s153, %s155
      %p162 = scmp.eq.s32.totalorder %s40, 1
      %p163 = por %p161, %p162
      %p164 = scmp.ne.s32.totalorder %s155, %s156
      %p165 = scmp.eq.s32.totalorder %s40, 0
      %p166 = por %p164, %p165
      %p167 = scmp.ne.s32.totalorder %s155, %s156
      %p168 = scmp.eq.s32.totalorder %s41, 1
      %p169 = por %p167, %p168
      %p171 = scmp.ne.s32.totalorder %s156, %s170
      %p172 = scmp.eq.s32.totalorder %s41, 0
      %p173 = por %p171, %p172
      %s175 = sadd.s32 %s174, 1
      %p178 = scmp.eq.s32.totalorder %s35, 1
      %p179 = scmp.ne.s32.totalorder %s174, %s176
      %p180 = scmp.eq.s32.totalorder %s35, 0
      %p181 = por %p179, %p180
      %p182 = scmp.ne.s32.totalorder %s174, %s176
      %p183 = scmp.eq.s32.totalorder %s40, 1
      %p184 = por %p182, %p183
      %p185 = scmp.ne.s32.totalorder %s176, %s177
      %p186 = scmp.eq.s32.totalorder %s40, 0
      %p187 = por %p185, %p186
      %p188 = scmp.ne.s32.totalorder %s176, %s177
      %p189 = scmp.eq.s32.totalorder %s41, 1
      %p190 = por %p188, %p189
      %p192 = scmp.ne.s32.totalorder %s177, %s191
      %p193 = scmp.eq.s32.totalorder %s41, 0
      %p194 = por %p192, %p193
      %s196 = sadd.s32 %s195, 1
      %p199 = scmp.eq.s32.totalorder %s35, 1
      %p200 = scmp.ne.s32.totalorder %s195, %s197
      %p201 = scmp.eq.s32.totalorder %s35, 0
      %p202 = por %p200, %p201
      %p203 = scmp.ne.s32.totalorder %s195, %s197
      %p204 = scmp.eq.s32.totalorder %s40, 1
      %p205 = por %p203, %p204
      %p206 = scmp.ne.s32.totalorder %s197, %s198
      %p207 = scmp.eq.s32.totalorder %s40, 0
      %p208 = por %p206, %p207
      %p209 = scmp.ne.s32.totalorder %s197, %s198
      %p210 = scmp.eq.s32.totalorder %s41, 1
      %p211 = por %p209, %p210
      %p213 = scmp.ne.s32.totalorder %s198, %s212
      %p214 = scmp.eq.s32.totalorder %s41, 0
      %p215 = por %p213, %p214
      %s217 = sadd.s32 %s216, 1
      %p220 = scmp.eq.s32.totalorder %s35, 1
      %p221 = scmp.ne.s32.totalorder %s216, %s218
      %p222 = scmp.eq.s32.totalorder %s35, 0
      %p223 = por %p221, %p222
      %p224 = scmp.ne.s32.totalorder %s216, %s218
      %p225 = scmp.eq.s32.totalorder %s40, 1
      %p226 = por %p224, %p225
      %p227 = scmp.ne.s32.totalorder %s218, %s219
      %p228 = scmp.eq.s32.totalorder %s40, 0
      %p229 = por %p227, %p228
      %p230 = scmp.ne.s32.totalorder %s218, %s219
      %p231 = scmp.eq.s32.totalorder %s41, 1
      %p232 = por %p230, %p231
      %p234 = scmp.ne.s32.totalorder %s219, %s233
      %p235 = scmp.eq.s32.totalorder %s41, 0
      %p236 = por %p234, %p235
      %s238 = sadd.s32 %s237, 1
      %p241 = scmp.eq.s32.totalorder %s35, 1
      %p242 = scmp.ne.s32.totalorder %s237, %s239
      %p243 = scmp.eq.s32.totalorder %s35, 0
      %p244 = por %p242, %p243
      %p245 = scmp.ne.s32.totalorder %s237, %s239
      %p246 = scmp.eq.s32.totalorder %s40, 1
      %p247 = por %p245, %p246
      %p248 = scmp.ne.s32.totalorder %s239, %s240
      %p249 = scmp.eq.s32.totalorder %s40, 0
      %p250 = por %p248, %p249
      %p251 = scmp.ne.s32.totalorder %s239, %s240
      %p252 = scmp.eq.s32.totalorder %s41, 1
      %p253 = por %p251, %p252
      %p255 = scmp.ne.s32.totalorder %s240, %s254
      %p256 = scmp.eq.s32.totalorder %s41, 0
      %p257 = por %p255, %p256
      %s259 = sadd.s32 %s258, 1
      %p262 = scmp.eq.s32.totalorder %s35, 1
      %p263 = scmp.ne.s32.totalorder %s258, %s260
      %p264 = scmp.eq.s32.totalorder %s35, 0
      %p265 = por %p263, %p264
      %p266 = scmp.ne.s32.totalorder %s258, %s260
      %p267 = scmp.eq.s32.totalorder %s40, 1
      %p268 = por %p266, %p267
      %p269 = scmp.ne.s32.totalorder %s260, %s261
      %p270 = scmp.eq.s32.totalorder %s40, 0
      %p271 = por %p269, %p270
      %p272 = scmp.ne.s32.totalorder %s260, %s261
      %p273 = scmp.eq.s32.totalorder %s41, 1
      %p274 = por %p272, %p273
      %p276 = scmp.ne.s32.totalorder %s261, %s275
      %p277 = scmp.eq.s32.totalorder %s41, 0
      %p278 = por %p276, %p277
      %s280 = sadd.s32 %s279, 1
      %p283 = scmp.eq.s32.totalorder %s35, 1
      %p284 = scmp.ne.s32.totalorder %s279, %s281
      %p285 = scmp.eq.s32.totalorder %s35, 0
      %p286 = por %p284, %p285
      %p287 = scmp.ne.s32.totalorder %s279, %s281
      %p288 = scmp.eq.s32.totalorder %s40, 1
      %p289 = por %p287, %p288
      %p290 = scmp.ne.s32.totalorder %s281, %s282
      %p291 = scmp.eq.s32.totalorder %s40, 0
      %p292 = por %p290, %p291
      %p293 = scmp.ne.s32.totalorder %s281, %s282
      %p294 = scmp.eq.s32.totalorder %s41, 1
      %p295 = por %p293, %p294
      %p297 = scmp.ne.s32.totalorder %s282, %s296
      %p298 = scmp.eq.s32.totalorder %s41, 0
      %p299 = por %p297, %p298
      %s301 = sadd.s32 %s300, 1
      %p304 = scmp.eq.s32.totalorder %s35, 1
      %p305 = scmp.ne.s32.totalorder %s300, %s302
      %p306 = scmp.eq.s32.totalorder %s35, 0
      %p307 = por %p305, %p306
      %p308 = scmp.ne.s32.totalorder %s300, %s302
      %p309 = scmp.eq.s32.totalorder %s40, 1
      %p310 = por %p308, %p309
      %p311 = scmp.ne.s32.totalorder %s302, %s303
      %p312 = scmp.eq.s32.totalorder %s40, 0
      %p313 = por %p311, %p312
      %p314 = scmp.ne.s32.totalorder %s302, %s303
      %p315 = scmp.eq.s32.totalorder %s41, 1
      %p316 = por %p314, %p315
      %p318 = scmp.ne.s32.totalorder %s303, %s317
      %p319 = scmp.eq.s32.totalorder %s41, 0
      %p320 = por %p318, %p319
      %s322 = sadd.s32 %s321, 1
      %p325 = scmp.eq.s32.totalorder %s35, 1
      %p326 = scmp.ne.s32.totalorder %s321, %s323
      %p327 = scmp.eq.s32.totalorder %s35, 0
      %p328 = por %p326, %p327
      %p329 = scmp.ne.s32.totalorder %s321, %s323
      %p330 = scmp.eq.s32.totalorder %s40, 1
      %p331 = por %p329, %p330
      %p332 = scmp.ne.s32.totalorder %s323, %s324
      %p333 = scmp.eq.s32.totalorder %s40, 0
      %p334 = por %p332, %p333
      %p335 = scmp.ne.s32.totalorder %s323, %s324
      %p336 = scmp.eq.s32.totalorder %s41, 1
      %p337 = por %p335, %p336
      %p339 = scmp.ne.s32.totalorder %s324, %s338
      %p340 = scmp.eq.s32.totalorder %s41, 0
      %p341 = por %p339, %p340
      %s343 = sadd.s32 %s342, 1
      %p346 = scmp.eq.s32.totalorder %s35, 1
      %p347 = scmp.ne.s32.totalorder %s342, %s344
      %p348 = scmp.eq.s32.totalorder %s35, 0
      %p349 = por %p347, %p348
      %p350 = scmp.ne.s32.totalorder %s342, %s344
      %p351 = scmp.eq.s32.totalorder %s40, 1
      %p352 = por %p350, %p351
      %p353 = scmp.ne.s32.totalorder %s344, %s345
      %p354 = scmp.eq.s32.totalorder %s40, 0
      %p355 = por %p353, %p354
      %p356 = scmp.ne.s32.totalorder %s344, %s345
      %p357 = scmp.eq.s32.totalorder %s41, 1
      %p358 = por %p356, %p357
      %p360 = scmp.ne.s32.totalorder %s345, %s359
      %p361 = scmp.eq.s32.totalorder %s41, 0
      %p362 = por %p360, %p361
      %s363 = ssub.s32 %s35, %s42
      %p364 = scmp.eq.s32.totalorder %s363, 0
      %s366 = sadd.s32 %s365, 1
      %s367 = scalar_select %p364, %s365, %s366
      %p370 = pneg %p364
      %p371 = scmp.eq.s32.totalorder %s35, 1
      %p372 = por %p370, %p371
      %p373 = scmp.ne.s32.totalorder %s365, %s368
      %p374 = scmp.eq.s32.totalorder %s35, 0
      %p375 = por %p373, %p374
      %p376 = scmp.ne.s32.totalorder %s365, %s368
      %p377 = scmp.eq.s32.totalorder %s40, 1
      %p378 = por %p376, %p377
      %p379 = scmp.ne.s32.totalorder %s368, %s369
      %p380 = scmp.eq.s32.totalorder %s40, 0
      %p381 = por %p379, %p380
      %p382 = scmp.ne.s32.totalorder %s368, %s369
      %p383 = scmp.eq.s32.totalorder %s41, 1
      %p384 = por %p382, %p383
      %p386 = scmp.ne.s32.totalorder %s369, %s385
      %p387 = scmp.eq.s32.totalorder %s41, 0
      %p388 = por %p386, %p387
      %p389 = scmp.le.s32.totalorder 1, %s35
      %p390 = scmp.lt.s32.totalorder %s35, 3
      %p391 = pnand %p389, %p390
      %p392 = pneg %p391
      // Predicated region
      $region9: #{tpu_custom_call.1} parent=5 // pred_check
        _
      $region10: #{tpu_custom_call.1} parent=5 // pred_check_branch
        %394 = sbr.rel (%p391) target = $region12
      $region11: #{tpu_custom_call.1} parent=5 // pred_region
        %s395 = ssub.s32 %s35, 1
        // Predicated region
        $region13: #{tpu_custom_call.1} parent=11 // pred_check
          %p396 = pneg %p82
        $region14: #{tpu_custom_call.1} parent=11 // pred_check_branch
          %398 = sbr.rel (%p396) target = $region16
        $region15: #{tpu_custom_call.1} parent=11 // pred_region
          _
        $region16: #{tpu_custom_call.1} parent=11 // pred_fallthru
          _
        // Predicated region
        $region17: #{tpu_custom_call.1} parent=11 // pred_check
          %p399 = pneg %p103
        $region18: #{tpu_custom_call.1} parent=11 // pred_check_branch
          %401 = sbr.rel (%p399) target = $region20
        $region19: #{tpu_custom_call.1} parent=11 // pred_region
          _
        $region20: #{tpu_custom_call.1} parent=11 // pred_fallthru
          _
        // Predicated region
        $region21: #{tpu_custom_call.1} parent=11 // pred_check
          %p402 = pneg %p124
        $region22: #{tpu_custom_call.1} parent=11 // pred_check_branch
          %404 = sbr.rel (%p402) target = $region24
        $region23: #{tpu_custom_call.1} parent=11 // pred_region
          _
        $region24: #{tpu_custom_call.1} parent=11 // pred_fallthru
          _
        // Predicated region
        $region25: #{tpu_custom_call.1} parent=11 // pred_check
          %p405 = pneg %p145
        $region26: #{tpu_custom_call.1} parent=11 // pred_check_branch
          %407 = sbr.rel (%p405) target = $region28
        $region27: #{tpu_custom_call.1} parent=11 // pred_region
          _
        $region28: #{tpu_custom_call.1} parent=11 // pred_fallthru
          _
        // Predicated region
        $region29: #{tpu_custom_call.1} parent=11 // pred_check
          %p408 = pneg %p166
        $region30: #{tpu_custom_call.1} parent=11 // pred_check_branch
          %410 = sbr.rel (%p408) target = $region32
        $region31: #{tpu_custom_call.1} parent=11 // pred_region
          _
        $region32: #{tpu_custom_call.1} parent=11 // pred_fallthru
          _
        // Predicated region
        $region33: #{tpu_custom_call.1} parent=11 // pred_check
          %p411 = pneg %p187
        $region34: #{tpu_custom_call.1} parent=11 // pred_check_branch
          %413 = sbr.rel (%p411) target = $region36
        $region35: #{tpu_custom_call.1} parent=11 // pred_region
          _
        $region36: #{tpu_custom_call.1} parent=11 // pred_fallthru
          _
        // Predicated region
        $region37: #{tpu_custom_call.1} parent=11 // pred_check
          %p414 = pneg %p208
        $region38: #{tpu_custom_call.1} parent=11 // pred_check_branch
          %416 = sbr.rel (%p414) target = $region40
        $region39: #{tpu_custom_call.1} parent=11 // pred_region
          _
        $region40: #{tpu_custom_call.1} parent=11 // pred_fallthru
          _
        // Predicated region
        $region41: #{tpu_custom_call.1} parent=11 // pred_check
          %p417 = pneg %p229
        $region42: #{tpu_custom_call.1} parent=11 // pred_check_branch
          %419 = sbr.rel (%p417) target = $region44
        $region43: #{tpu_custom_call.1} parent=11 // pred_region
          _
        $region44: #{tpu_custom_call.1} parent=11 // pred_fallthru
          _
        // Predicated region
        $region45: #{tpu_custom_call.1} parent=11 // pred_check
          %p420 = pneg %p250
        $region46: #{tpu_custom_call.1} parent=11 // pred_check_branch
          %422 = sbr.rel (%p420) target = $region48
        $region47: #{tpu_custom_call.1} parent=11 // pred_region
          _
        $region48: #{tpu_custom_call.1} parent=11 // pred_fallthru
          _
        // Predicated region
        $region49: #{tpu_custom_call.1} parent=11 // pred_check
          %p423 = pneg %p271
        $region50: #{tpu_custom_call.1} parent=11 // pred_check_branch
          %425 = sbr.rel (%p423) target = $region52
        $region51: #{tpu_custom_call.1} parent=11 // pred_region
          _
        $region52: #{tpu_custom_call.1} parent=11 // pred_fallthru
          _
        // Predicated region
        $region53: #{tpu_custom_call.1} parent=11 // pred_check
          %p426 = pneg %p292
        $region54: #{tpu_custom_call.1} parent=11 // pred_check_branch
          %428 = sbr.rel (%p426) target = $region56
        $region55: #{tpu_custom_call.1} parent=11 // pred_region
          _
        $region56: #{tpu_custom_call.1} parent=11 // pred_fallthru
          _
        // Predicated region
        $region57: #{tpu_custom_call.1} parent=11 // pred_check
          %p429 = pneg %p313
        $region58: #{tpu_custom_call.1} parent=11 // pred_check_branch
          %431 = sbr.rel (%p429) target = $region60
        $region59: #{tpu_custom_call.1} parent=11 // pred_region
          _
        $region60: #{tpu_custom_call.1} parent=11 // pred_fallthru
          _
        // Predicated region
        $region61: #{tpu_custom_call.1} parent=11 // pred_check
          %p432 = pneg %p334
        $region62: #{tpu_custom_call.1} parent=11 // pred_check_branch
          %434 = sbr.rel (%p432) target = $region64
        $region63: #{tpu_custom_call.1} parent=11 // pred_region
          _
        $region64: #{tpu_custom_call.1} parent=11 // pred_fallthru
          _
        // Predicated region
        $region65: #{tpu_custom_call.1} parent=11 // pred_check
          %p435 = pneg %p355
        $region66: #{tpu_custom_call.1} parent=11 // pred_check_branch
          %437 = sbr.rel (%p435) target = $region68
        $region67: #{tpu_custom_call.1} parent=11 // pred_region
          _
        $region68: #{tpu_custom_call.1} parent=11 // pred_fallthru
          _
      $region12: #{tpu_custom_call.1} parent=5 // pred_fallthru
        _
      %p438 = scmp.lt.s32.totalorder %s35, 2
      // Predicated region
      $region69: #{tpu_custom_call.1} parent=5 // pred_check
        %p439 = pneg %p438
      $region70: #{tpu_custom_call.1} parent=5 // pred_check_branch
        %441 = sbr.rel (%p439) target = $region72
      $region71: #{tpu_custom_call.1} parent=5 // pred_region
        // Predicated region
        $region73: #{tpu_custom_call.1} parent=71 // pred_check
          %p442 = pneg %p55
        $region74: #{tpu_custom_call.1} parent=71 // pred_check_branch
          %444 = sbr.rel (%p442) target = $region76
        $region75: #{tpu_custom_call.1} parent=71 // pred_region
          %s445 = sand.u32 %s45, 1
          %s446 = scalar_lea.sflag [#allocation7], %s445
          %s447 = sand.u32 %s45, 1
          %s448 = smul.addr %s447, 32
          %s449 = scalar_lea.vmem [#allocation6], %s448
          %s450 = smul.u32 4, %s35
          %s452 = ssub.s32 512, 512
          %453 = vsyncadd %s446, %s452
          %s454 = smul.addr %s450, 128
          %s455 = scalar_lea.hbm %s0, %s454
          %s457 = sshll.u32 %s449, 4
          %s458 = int_to_ptr.vmem [resolvable:$true] %s457
          %460 = dma.hbm_to_vmem [thread:$0]  %s455, 512, %s458, %s446
        $region76: #{tpu_custom_call.1} parent=71 // pred_fallthru
          _
      $region72: #{tpu_custom_call.1} parent=5 // pred_fallthru
        _
      %p461 = scmp.le.s32.totalorder 1, %s35
      %p462 = scmp.lt.s32.totalorder %s35, 3
      %p463 = pnand %p461, %p462
      %p464 = pneg %p463
      // Predicated region
      $region77: #{tpu_custom_call.1} parent=5 // pred_check
        _
      $region78: #{tpu_custom_call.1} parent=5 // pred_check_branch
        %466 = sbr.rel (%p463) target = $region80
      $region79: #{tpu_custom_call.1} parent=5 // pred_region
        %s467 = ssub.s32 %s35, 1
        %s468 = sand.u32 %s48, 1
        %s469 = scalar_lea.sflag [#allocation7], %s468
        %s470 = sand.u32 %s48, 1
        %s471 = smul.addr %s470, 32
        %s472 = scalar_lea.vmem [#allocation6], %s471
        // Predicated region
        $region81: #{tpu_custom_call.1} parent=79 // pred_check
          %p473 = pneg %p61
        $region82: #{tpu_custom_call.1} parent=79 // pred_check_branch
          %475 = sbr.rel (%p473) target = $region84
        $region83: #{tpu_custom_call.1} parent=79 // pred_region
          %476 = dma.done %s469, 512
        $region84: #{tpu_custom_call.1} parent=79 // pred_fallthru
          _
        %s477 = sand.u32 %s48, 1
        %s478 = scalar_lea.sflag [#allocation7], %s477
        %s479 = sand.u32 %s48, 1
        %s480 = smul.addr %s479, 32
        %s481 = scalar_lea.vmem [#allocation6], %s480
        %p482 = pneg %p61
        %p483 = pneg %p58
        %p484 = pneg %p82
        %p485 = pneg %p79
        %p486 = pneg %p103
        %p487 = pneg %p100
        %p488 = pneg %p124
        %p489 = pneg %p121
        %p490 = pneg %p145
        %p491 = pneg %p142
        %p492 = pneg %p166
        %p493 = pneg %p163
        %p494 = pneg %p187
        %p495 = pneg %p184
        %p496 = pneg %p208
        %p497 = pneg %p205
        %p498 = pneg %p229
        %p499 = pneg %p226
        %p500 = pneg %p250
        %p501 = pneg %p247
        %p502 = pneg %p271
        %p503 = pneg %p268
        %p504 = pneg %p292
        %p505 = pneg %p289
        %p506 = pneg %p313
        %p507 = pneg %p310
        %p508 = pneg %p334
        %p509 = pneg %p331
        %p510 = pneg %p355
        %p511 = pneg %p352
        %p512 = pneg %p381
        %p513 = pneg %p378
        %s514 = sand.u32 %s368, 1
        %s515 = scalar_lea.sflag [#allocation8], %s514
        %s516 = sand.u32 %s368, 1
        %s517 = smul.addr %s516, 32
        %s518 = scalar_lea.vmem [#allocation9], %s517
        %s519 = smul.u32 4, %s40
        %s520 = smul.u32 4, %s40
        %v522 = vld [vmem:[%s472] sm:$0xff]
        %v523 = vld [vmem:[%s472 + $0x8] sm:$0xff]
        %v524 = vld [vmem:[%s472 + $0x10] sm:$0xff]
        %v525 = vld [vmem:[%s472 + $0x18] sm:$0xff]
        %526 = vrot.lane.b32.xlu0 %v522, 17
        %v527 = vpop.permute.xlu0 %526
        %528 = vrot.lane.b32.xlu0 %v523, 17
        %v529 = vpop.permute.xlu0 %528
        %530 = vrot.lane.b32.xlu0 %v524, 17
        %v531 = vpop.permute.xlu0 %530
        %532 = vrot.lane.b32.xlu0 %v525, 17
        %v533 = vpop.permute.xlu0 %532
        %v534 = vlaneseq
        %v535 = vand.u32 %v534, 127
        %vm536 = vcmp.lt.s32.totalorder %v535, 17
        %v537 = vsel %vm536, %v531, %v533
        %v538 = vsel %vm536, %v529, %v531
        %v539 = vsel %vm536, %v527, %v529
        %v540 = vsel %vm536, %v533, %v527
        %v541 = vld [vmem:[%s1] sm:$0xf]
        %v543 = vlaneseq
        %v544 = vshrl.u32 %v543, 7
        %v545 = vsub.s32 0, %v544
        %v546 = vrot.slane %v541, %v545
        %v547 = vlaneseq
        %v548 = vshrl.u32 %v547, 7
        %v549 = vsub.s32 1, %v548
        %v550 = vrot.slane %v541, %v549
        %v551 = vlaneseq
        %v552 = vshrl.u32 %v551, 7
        %v553 = vsub.s32 2, %v552
        %v554 = vrot.slane %v541, %v553
        %v555 = vlaneseq
        %v556 = vshrl.u32 %v555, 7
        %v557 = vsub.s32 3, %v556
        %v558 = vrot.slane %v541, %v557
        %v563 = vmul.f32 %v540, %v546
        %v564 = vmul.f32 %v539, %v550
        %v565 = vmul.f32 %v538, %v554
        %v566 = vmul.f32 %v537, %v558
        %567 = vrot.lane.b32.xlu0 %v522, 16
        %v568 = vpop.permute.xlu0 %567
        %569 = vrot.lane.b32.xlu0 %v523, 16
        %v570 = vpop.permute.xlu0 %569
        %571 = vrot.lane.b32.xlu0 %v524, 16
        %v572 = vpop.permute.xlu0 %571
        %573 = vrot.lane.b32.xlu0 %v525, 16
        %v574 = vpop.permute.xlu0 %573
        %vm575 = vcmp.lt.s32.totalorder %v535, 16
        %v576 = vsel %vm575, %v572, %v574
        %v577 = vsel %vm575, %v570, %v572
        %v578 = vsel %vm575, %v568, %v570
        %v579 = vsel %vm575, %v574, %v568
        %s580 = scalar_lea.vmem %s1, 4
        %v581 = vld [vmem:[%s580] sm:$0xf]
        %v583 = vlaneseq
        %v584 = vshrl.u32 %v583, 7
        %v585 = vsub.s32 0, %v584
        %v586 = vrot.slane %v581, %v585
        %v587 = vlaneseq
        %v588 = vshrl.u32 %v587, 7
        %v589 = vsub.s32 1, %v588
        %v590 = vrot.slane %v581, %v589
        %v591 = vlaneseq
        %v592 = vshrl.u32 %v591, 7
        %v593 = vsub.s32 2, %v592
        %v594 = vrot.slane %v581, %v593
        %v595 = vlaneseq
        %v596 = vshrl.u32 %v595, 7
        %v597 = vsub.s32 3, %v596
        %v598 = vrot.slane %v581, %v597
        %v603 = vmul.f32 %v579, %v586
        %v604 = vmul.f32 %v578, %v590
        %v605 = vmul.f32 %v577, %v594
        %v606 = vmul.f32 %v576, %v598
        %607 = vrot.lane.b32.xlu0 %v522, 15
        %v608 = vpop.permute.xlu0 %607
        %609 = vrot.lane.b32.xlu0 %v523, 15
        %v610 = vpop.permute.xlu0 %609
        %611 = vrot.lane.b32.xlu0 %v524, 15
        %v612 = vpop.permute.xlu0 %611
        %613 = vrot.lane.b32.xlu0 %v525, 15
        %v614 = vpop.permute.xlu0 %613
        %vm615 = vcmp.lt.s32.totalorder %v535, 15
        %v616 = vsel %vm615, %v612, %v614
        %v617 = vsel %vm615, %v610, %v612
        %v618 = vsel %vm615, %v608, %v610
        %v619 = vsel %vm615, %v614, %v608
        %s620 = scalar_lea.vmem %s1, 8
        %v621 = vld [vmem:[%s620] sm:$0xf]
        %v623 = vlaneseq
        %v624 = vshrl.u32 %v623, 7
        %v625 = vsub.s32 0, %v624
        %v626 = vrot.slane %v621, %v625
        %v627 = vlaneseq
        %v628 = vshrl.u32 %v627, 7
        %v629 = vsub.s32 1, %v628
        %v630 = vrot.slane %v621, %v629
        %v631 = vlaneseq
        %v632 = vshrl.u32 %v631, 7
        %v633 = vsub.s32 2, %v632
        %v634 = vrot.slane %v621, %v633
        %v635 = vlaneseq
        %v636 = vshrl.u32 %v635, 7
        %v637 = vsub.s32 3, %v636
        %v638 = vrot.slane %v621, %v637
        %v643 = vmul.f32 %v619, %v626
        %v644 = vmul.f32 %v618, %v630
        %v645 = vmul.f32 %v617, %v634
        %v646 = vmul.f32 %v616, %v638
        %647 = vrot.lane.b32.xlu0 %v522, 1
        %v648 = vpop.permute.xlu0 %647
        %649 = vrot.lane.b32.xlu0 %v523, 1
        %v650 = vpop.permute.xlu0 %649
        %651 = vrot.lane.b32.xlu0 %v524, 1
        %v652 = vpop.permute.xlu0 %651
        %653 = vrot.lane.b32.xlu0 %v525, 1
        %v654 = vpop.permute.xlu0 %653
        %vm655 = vcmp.lt.s32.totalorder %v535, 1
        %v656 = vsel %vm655, %v652, %v654
        %v657 = vsel %vm655, %v650, %v652
        %v658 = vsel %vm655, %v648, %v650
        %v659 = vsel %vm655, %v654, %v648
        %s660 = scalar_lea.vmem %s1, 12
        %v661 = vld [vmem:[%s660] sm:$0xf]
        %v663 = vlaneseq
        %v664 = vshrl.u32 %v663, 7
        %v665 = vsub.s32 0, %v664
        %v666 = vrot.slane %v661, %v665
        %v667 = vlaneseq
        %v668 = vshrl.u32 %v667, 7
        %v669 = vsub.s32 1, %v668
        %v670 = vrot.slane %v661, %v669
        %v671 = vlaneseq
        %v672 = vshrl.u32 %v671, 7
        %v673 = vsub.s32 2, %v672
        %v674 = vrot.slane %v661, %v673
        %v675 = vlaneseq
        %v676 = vshrl.u32 %v675, 7
        %v677 = vsub.s32 3, %v676
        %v678 = vrot.slane %v661, %v677
        %v683 = vmul.f32 %v659, %v666
        %v684 = vmul.f32 %v658, %v670
        %v685 = vmul.f32 %v657, %v674
        %v686 = vmul.f32 %v656, %v678
        %687 = vrot.lane.b32.xlu0 %v522, 127
        %v688 = vpop.permute.xlu0 %687
        %689 = vrot.lane.b32.xlu0 %v523, 127
        %v690 = vpop.permute.xlu0 %689
        %691 = vrot.lane.b32.xlu0 %v524, 127
        %v692 = vpop.permute.xlu0 %691
        %693 = vrot.lane.b32.xlu0 %v525, 127
        %v694 = vpop.permute.xlu0 %693
        %vm695 = vcmp.lt.s32.totalorder %v535, 127
        %v696 = vsel %vm695, %v692, %v694
        %v697 = vsel %vm695, %v690, %v692
        %v698 = vsel %vm695, %v688, %v690
        %v699 = vsel %vm695, %v694, %v688
        %s700 = scalar_lea.vmem %s1, 20
        %v701 = vld [vmem:[%s700] sm:$0xf]
        %v703 = vlaneseq
        %v704 = vshrl.u32 %v703, 7
        %v705 = vsub.s32 0, %v704
        %v706 = vrot.slane %v701, %v705
        %v707 = vlaneseq
        %v708 = vshrl.u32 %v707, 7
        %v709 = vsub.s32 1, %v708
        %v710 = vrot.slane %v701, %v709
        %v711 = vlaneseq
        %v712 = vshrl.u32 %v711, 7
        %v713 = vsub.s32 2, %v712
        %v714 = vrot.slane %v701, %v713
        %v715 = vlaneseq
        %v716 = vshrl.u32 %v715, 7
        %v717 = vsub.s32 3, %v716
        %v718 = vrot.slane %v701, %v717
        %v723 = vmul.f32 %v698, %v706
        %v724 = vmul.f32 %v697, %v710
        %v725 = vmul.f32 %v696, %v714
        %v726 = vmul.f32 %v699, %v718
        %727 = vrot.lane.b32.xlu0 %v522, 113
        %v728 = vpop.permute.xlu0 %727
        %729 = vrot.lane.b32.xlu0 %v523, 113
        %v730 = vpop.permute.xlu0 %729
        %731 = vrot.lane.b32.xlu0 %v524, 113
        %v732 = vpop.permute.xlu0 %731
        %733 = vrot.lane.b32.xlu0 %v525, 113
        %v734 = vpop.permute.xlu0 %733
        %vm735 = vcmp.lt.s32.totalorder %v535, 113
        %v736 = vsel %vm735, %v732, %v734
        %v737 = vsel %vm735, %v730, %v732
        %v738 = vsel %vm735, %v728, %v730
        %v739 = vsel %vm735, %v734, %v728
        %s740 = scalar_lea.vmem %s1, 24
        %v741 = vld [vmem:[%s740] sm:$0xf]
        %v743 = vlaneseq
        %v744 = vshrl.u32 %v743, 7
        %v745 = vsub.s32 0, %v744
        %v746 = vrot.slane %v741, %v745
        %v747 = vlaneseq
        %v748 = vshrl.u32 %v747, 7
        %v749 = vsub.s32 1, %v748
        %v750 = vrot.slane %v741, %v749
        %v751 = vlaneseq
        %v752 = vshrl.u32 %v751, 7
        %v753 = vsub.s32 2, %v752
        %v754 = vrot.slane %v741, %v753
        %v755 = vlaneseq
        %v756 = vshrl.u32 %v755, 7
        %v757 = vsub.s32 3, %v756
        %v758 = vrot.slane %v741, %v757
        %v763 = vmul.f32 %v738, %v746
        %v764 = vmul.f32 %v737, %v750
        %v765 = vmul.f32 %v736, %v754
        %v766 = vmul.f32 %v739, %v758
        %767 = vrot.lane.b32.xlu0 %v522, 112
        %v768 = vpop.permute.xlu0 %767
        %769 = vrot.lane.b32.xlu0 %v523, 112
        %v770 = vpop.permute.xlu0 %769
        %771 = vrot.lane.b32.xlu0 %v524, 112
        %v772 = vpop.permute.xlu0 %771
        %773 = vrot.lane.b32.xlu0 %v525, 112
        %v774 = vpop.permute.xlu0 %773
        %vm775 = vcmp.lt.s32.totalorder %v535, 112
        %v776 = vsel %vm775, %v772, %v774
        %v777 = vsel %vm775, %v770, %v772
        %v778 = vsel %vm775, %v768, %v770
        %v779 = vsel %vm775, %v774, %v768
        %s780 = scalar_lea.vmem %s1, 28
        %v781 = vld [vmem:[%s780] sm:$0xf]
        %v783 = vlaneseq
        %v784 = vshrl.u32 %v783, 7
        %v785 = vsub.s32 0, %v784
        %v786 = vrot.slane %v781, %v785
        %v787 = vlaneseq
        %v788 = vshrl.u32 %v787, 7
        %v789 = vsub.s32 1, %v788
        %v790 = vrot.slane %v781, %v789
        %v791 = vlaneseq
        %v792 = vshrl.u32 %v791, 7
        %v793 = vsub.s32 2, %v792
        %v794 = vrot.slane %v781, %v793
        %v795 = vlaneseq
        %v796 = vshrl.u32 %v795, 7
        %v797 = vsub.s32 3, %v796
        %v798 = vrot.slane %v781, %v797
        %v803 = vmul.f32 %v778, %v786
        %v804 = vmul.f32 %v777, %v790
        %v805 = vmul.f32 %v776, %v794
        %v806 = vmul.f32 %v779, %v798
        %807 = vrot.lane.b32.xlu0 %v522, 111
        %v808 = vpop.permute.xlu0 %807
        %809 = vrot.lane.b32.xlu0 %v523, 111
        %v810 = vpop.permute.xlu0 %809
        %811 = vrot.lane.b32.xlu0 %v524, 111
        %v812 = vpop.permute.xlu0 %811
        %813 = vrot.lane.b32.xlu0 %v525, 111
        %v814 = vpop.permute.xlu0 %813
        %vm815 = vcmp.lt.s32.totalorder %v535, 111
        %v816 = vsel %vm815, %v812, %v814
        %v817 = vsel %vm815, %v810, %v812
        %v818 = vsel %vm815, %v808, %v810
        %v819 = vsel %vm815, %v814, %v808
        %s820 = scalar_lea.vmem %s1, 32
        %v821 = vld [vmem:[%s820] sm:$0xf]
        %v823 = vlaneseq
        %v824 = vshrl.u32 %v823, 7
        %v825 = vsub.s32 0, %v824
        %v826 = vrot.slane %v821, %v825
        %v827 = vlaneseq
        %v828 = vshrl.u32 %v827, 7
        %v829 = vsub.s32 1, %v828
        %v830 = vrot.slane %v821, %v829
        %v831 = vlaneseq
        %v832 = vshrl.u32 %v831, 7
        %v833 = vsub.s32 2, %v832
        %v834 = vrot.slane %v821, %v833
        %v835 = vlaneseq
        %v836 = vshrl.u32 %v835, 7
        %v837 = vsub.s32 3, %v836
        %v838 = vrot.slane %v821, %v837
        %v843 = vmul.f32 %v818, %v826
        %v844 = vmul.f32 %v817, %v830
        %v845 = vmul.f32 %v816, %v834
        %v846 = vmul.f32 %v819, %v838
        %v847 = vpack.c.bf16 %v603, %v563
        %v848 = vpack.c.bf16 %v604, %v564
        %v849 = vpack.c.bf16 %v605, %v565
        %v850 = vpack.c.bf16 %v606, %v566
        %v851 = vpack.c.bf16 %v683, %v643
        %v852 = vpack.c.bf16 %v684, %v644
        %v853 = vpack.c.bf16 %v685, %v645
        %v854 = vpack.c.bf16 %v686, %v646
        %v855 = vpack.c.bf16 %v723, %v522
        %v856 = vpack.c.bf16 %v724, %v523
        %v857 = vpack.c.bf16 %v725, %v524
        %v858 = vpack.c.bf16 %v726, %v525
        %v859 = vpack.c.bf16 %v803, %v763
        %v860 = vpack.c.bf16 %v804, %v764
        %v861 = vpack.c.bf16 %v805, %v765
        %v862 = vpack.c.bf16 %v806, %v766
        %v863 = vpack.c.bf16 %v843, %v843
        %v864 = vpack.c.bf16 %v844, %v844
        %v865 = vpack.c.bf16 %v845, %v845
        %v866 = vpack.c.bf16 %v846, %v846
        %v867 = vld [vmem:[%s3] sm:$0xf]
        %v868 = vld [vmem:[%s4] sm:$0xff]
        %870 = vset.pattern.permute.xlu0 0
        %871 = vperm.xlu0 %870, %v868
        %v872 = vpop.permute.xlu0 %871
        %vm874 = vcmask 588800
        %v876 = vsel %vm874, %v867, 0
        %vm878 = vcmask 1043456
        %v880 = vsel %vm878, %v863, 0
        %v883 = vsel %vm878, %v864, 0
        %v886 = vsel %vm878, %v865, 0
        %v889 = vsel %vm878, %v866, 0
        %891 = vmatprep.subr.bf16.mxu0 %v848
        %892 = vmatpush1.bf16.msra.mxu0 %v847
        %893 = vmatprep.subr.bf16.mxu0 %v852
        %894 = vmatpush1.bf16.msra.mxu0 %v851
        %895 = vmatprep.subr.bf16.mxu0 %v856
        %896 = vmatpush1.bf16.msra.mxu0 %v855
        %897 = vmatprep.subr.bf16.mxu0 %v860
        %898 = vmatpush1.bf16.msra.mxu0 %v859
        %899 = vmatprep.subr.bf16.mxu0 %v883
        %900 = vmatpush1.bf16.msra.mxu0 %v880
        %901 = vmatprep.subr.bf16.mxu0 0
        %902 = vmatpush1.bf16.msra.mxu0 0
        %903 = vmatprep.subr.bf16.mxu0 0
        %904 = vmatpush1.bf16.msra.mxu0 0
        %905 = vmatprep.subr.bf16.mxu0 0
        %906 = vmatpush1.bf16.msra.mxu0 0
        %907 = vmatprep.subr.bf16.mxu0 0
        %908 = vmatpush1.bf16.msra.mxu0 0
        %909 = vmatprep.subr.bf16.mxu0 0
        %910 = vmatpush1.bf16.msra.mxu0 0
        %911 = vmatprep.subr.bf16.mxu0 0
        %912 = vmatpush1.bf16.msra.mxu0 0
        %913 = vmatprep.subr.bf16.mxu0 0
        %914 = vmatpush1.bf16.msra.mxu0 0
        %915 = vmatprep.subr.bf16.mxu0 0
        %916 = vmatpush1.bf16.msra.mxu0 0
        %917 = vmatprep.subr.bf16.mxu0 0
        %918 = vmatpush1.bf16.msra.mxu0 0
        %919 = vmatprep.subr.bf16.mxu0 0
        %920 = vmatpush1.bf16.msra.mxu0 0
        %921 = vmatprep.subr.bf16.mxu0 0
        %922 = vmatpush1.bf16.msra.mxu0 0
        %923 = vmatprep.mubr.bf16.mxu0 0
        %924 = vmatmul.mubr.bf16.gmra.mrb[0].mxu0 %v876
        %v925 = vpop.f32.mrb[0].mxu0
        %v926 = vadd.f32 %v872, %v925
        %v927 = vpop.f32.mrb[0].mxu0
        %v928 = vadd.f32 %v872, %v927
        %v929 = vpop.f32.mrb[0].mxu0
        %v930 = vpop.f32.mrb[0].mxu0
        %931 = vdwg.mxu0
        %932 = vmatprep.subr.bf16.mxu0 %v850
        %933 = vmatpush1.bf16.msra.mxu0 %v849
        %934 = vmatprep.subr.bf16.mxu0 %v854
        %935 = vmatpush1.bf16.msra.mxu0 %v853
        %936 = vmatprep.subr.bf16.mxu0 %v858
        %937 = vmatpush1.bf16.msra.mxu0 %v857
        %938 = vmatprep.subr.bf16.mxu0 %v862
        %939 = vmatpush1.bf16.msra.mxu0 %v861
        %940 = vmatprep.subr.bf16.mxu0 %v889
        %941 = vmatpush1.bf16.msra.mxu0 %v886
        %942 = vmatprep.subr.bf16.mxu0 0
        %943 = vmatpush1.bf16.msra.mxu0 0
        %944 = vmatprep.subr.bf16.mxu0 0
        %945 = vmatpush1.bf16.msra.mxu0 0
        %946 = vmatprep.subr.bf16.mxu0 0
        %947 = vmatpush1.bf16.msra.mxu0 0
        %948 = vmatprep.subr.bf16.mxu0 0
        %949 = vmatpush1.bf16.msra.mxu0 0
        %950 = vmatprep.subr.bf16.mxu0 0
        %951 = vmatpush1.bf16.msra.mxu0 0
        %952 = vmatprep.subr.bf16.mxu0 0
        %953 = vmatpush1.bf16.msra.mxu0 0
        %954 = vmatprep.subr.bf16.mxu0 0
        %955 = vmatpush1.bf16.msra.mxu0 0
        %956 = vmatprep.subr.bf16.mxu0 0
        %957 = vmatpush1.bf16.msra.mxu0 0
        %958 = vmatprep.subr.bf16.mxu0 0
        %959 = vmatpush1.bf16.msra.mxu0 0
        %960 = vmatprep.subr.bf16.mxu0 0
        %961 = vmatpush1.bf16.msra.mxu0 0
        %962 = vmatprep.subr.bf16.mxu0 0
        %963 = vmatpush1.bf16.msra.mxu0 0
        %964 = vmatprep.mubr.bf16.mxu0 0
        %965 = vmatmul.mubr.bf16.gmra.mrb[0].mxu0 %v876
        %v966 = vpop.f32.mrb[0].mxu0
        %v967 = vadd.f32 %v872, %v966
        %v968 = vpop.f32.mrb[0].mxu0
        %v969 = vadd.f32 %v872, %v968
        %v970 = vpop.f32.mrb[0].mxu0
        %v971 = vpop.f32.mrb[0].mxu0
        %972 = vdwg.mxu0
        %v973 = vmax.f32 %v926, 0.0
        %v974 = vmax.f32 %v928, 0.0
        %v975 = vmax.f32 %v967, 0.0
        %v976 = vmax.f32 %v969, 0.0
        %v977 = vadd.f32 %v522, %v973
        %v978 = vadd.f32 %v523, %v974
        %v979 = vadd.f32 %v524, %v975
        %v980 = vadd.f32 %v525, %v976
        %981 = vrot.lane.b32.xlu0 %v977, 17
        %v982 = vpop.permute.xlu0 %981
        %983 = vrot.lane.b32.xlu0 %v978, 17
        %v984 = vpop.permute.xlu0 %983
        %985 = vrot.lane.b32.xlu0 %v979, 17
        %v986 = vpop.permute.xlu0 %985
        %987 = vrot.lane.b32.xlu0 %v980, 17
        %v988 = vpop.permute.xlu0 %987
        %v989 = vsel %vm536, %v986, %v988
        %v990 = vsel %vm536, %v984, %v986
        %v991 = vsel %vm536, %v982, %v984
        %v992 = vsel %vm536, %v988, %v982
        %v993 = vmul.f32 %v992, %v546
        %v994 = vmul.f32 %v991, %v550
        %v995 = vmul.f32 %v990, %v554
        %v996 = vmul.f32 %v989, %v558
        %997 = vrot.lane.b32.xlu0 %v977, 16
        %v998 = vpop.permute.xlu0 %997
        %999 = vrot.lane.b32.xlu0 %v978, 16
        %v1000 = vpop.permute.xlu0 %999
        %1001 = vrot.lane.b32.xlu0 %v979, 16
        %v1002 = vpop.permute.xlu0 %1001
        %1003 = vrot.lane.b32.xlu0 %v980, 16
        %v1004 = vpop.permute.xlu0 %1003
        %v1005 = vsel %vm575, %v1002, %v1004
        %v1006 = vsel %vm575, %v1000, %v1002
        %v1007 = vsel %vm575, %v998, %v1000
        %v1008 = vsel %vm575, %v1004, %v998
        %v1009 = vmul.f32 %v1008, %v586
        %v1010 = vmul.f32 %v1007, %v590
        %v1011 = vmul.f32 %v1006, %v594
        %v1012 = vmul.f32 %v1005, %v598
        %1013 = vrot.lane.b32.xlu0 %v977, 15
        %v1014 = vpop.permute.xlu0 %1013
        %1015 = vrot.lane.b32.xlu0 %v978, 15
        %v1016 = vpop.permute.xlu0 %1015
        %1017 = vrot.lane.b32.xlu0 %v979, 15
        %v1018 = vpop.permute.xlu0 %1017
        %1019 = vrot.lane.b32.xlu0 %v980, 15
        %v1020 = vpop.permute.xlu0 %1019
        %v1021 = vsel %vm615, %v1018, %v1020
        %v1022 = vsel %vm615, %v1016, %v1018
        %v1023 = vsel %vm615, %v1014, %v1016
        %v1024 = vsel %vm615, %v1020, %v1014
        %v1025 = vmul.f32 %v1024, %v626
        %v1026 = vmul.f32 %v1023, %v630
        %v1027 = vmul.f32 %v1022, %v634
        %v1028 = vmul.f32 %v1021, %v638
        %1029 = vrot.lane.b32.xlu0 %v977, 1
        %v1030 = vpop.permute.xlu0 %1029
        %1031 = vrot.lane.b32.xlu0 %v978, 1
        %v1032 = vpop.permute.xlu0 %1031
        %1033 = vrot.lane.b32.xlu0 %v979, 1
        %v1034 = vpop.permute.xlu0 %1033
        %1035 = vrot.lane.b32.xlu0 %v980, 1
        %v1036 = vpop.permute.xlu0 %1035
        %v1037 = vsel %vm655, %v1034, %v1036
        %v1038 = vsel %vm655, %v1032, %v1034
        %v1039 = vsel %vm655, %v1030, %v1032
        %v1040 = vsel %vm655, %v1036, %v1030
        %v1041 = vmul.f32 %v1040, %v666
        %v1042 = vmul.f32 %v1039, %v670
        %v1043 = vmul.f32 %v1038, %v674
        %v1044 = vmul.f32 %v1037, %v678
        %1045 = vrot.lane.b32.xlu0 %v977, 127
        %v1046 = vpop.permute.xlu0 %1045
        %1047 = vrot.lane.b32.xlu0 %v978, 127
        %v1048 = vpop.permute.xlu0 %1047
        %1049 = vrot.lane.b32.xlu0 %v979, 127
        %v1050 = vpop.permute.xlu0 %1049
        %1051 = vrot.lane.b32.xlu0 %v980, 127
        %v1052 = vpop.permute.xlu0 %1051
        %v1053 = vsel %vm695, %v1050, %v1052
        %v1054 = vsel %vm695, %v1048, %v1050
        %v1055 = vsel %vm695, %v1046, %v1048
        %v1056 = vsel %vm695, %v1052, %v1046
        %v1057 = vmul.f32 %v1055, %v706
        %v1058 = vmul.f32 %v1054, %v710
        %v1059 = vmul.f32 %v1053, %v714
        %v1060 = vmul.f32 %v1056, %v718
        %1061 = vrot.lane.b32.xlu0 %v977, 113
        %v1062 = vpop.permute.xlu0 %1061
        %1063 = vrot.lane.b32.xlu0 %v978, 113
        %v1064 = vpop.permute.xlu0 %1063
        %1065 = vrot.lane.b32.xlu0 %v979, 113
        %v1066 = vpop.permute.xlu0 %1065
        %1067 = vrot.lane.b32.xlu0 %v980, 113
        %v1068 = vpop.permute.xlu0 %1067
        %v1069 = vsel %vm735, %v1066, %v1068
        %v1070 = vsel %vm735, %v1064, %v1066
        %v1071 = vsel %vm735, %v1062, %v1064
        %v1072 = vsel %vm735, %v1068, %v1062
        %v1073 = vmul.f32 %v1071, %v746
        %v1074 = vmul.f32 %v1070, %v750
        %v1075 = vmul.f32 %v1069, %v754
        %v1076 = vmul.f32 %v1072, %v758
        %1077 = vrot.lane.b32.xlu0 %v977, 112
        %v1078 = vpop.permute.xlu0 %1077
        %1079 = vrot.lane.b32.xlu0 %v978, 112
        %v1080 = vpop.permute.xlu0 %1079
        %1081 = vrot.lane.b32.xlu0 %v979, 112
        %v1082 = vpop.permute.xlu0 %1081
        %1083 = vrot.lane.b32.xlu0 %v980, 112
        %v1084 = vpop.permute.xlu0 %1083
        %v1085 = vsel %vm775, %v1082, %v1084
        %v1086 = vsel %vm775, %v1080, %v1082
        %v1087 = vsel %vm775, %v1078, %v1080
        %v1088 = vsel %vm775, %v1084, %v1078
        %v1089 = vmul.f32 %v1087, %v786
        %v1090 = vmul.f32 %v1086, %v790
        %v1091 = vmul.f32 %v1085, %v794
        %v1092 = vmul.f32 %v1088, %v798
        %1093 = vrot.lane.b32.xlu0 %v977, 111
        %v1094 = vpop.permute.xlu0 %1093
        %1095 = vrot.lane.b32.xlu0 %v978, 111
        %v1096 = vpop.permute.xlu0 %1095
        %1097 = vrot.lane.b32.xlu0 %v979, 111
        %v1098 = vpop.permute.xlu0 %1097
        %1099 = vrot.lane.b32.xlu0 %v980, 111
        %v1100 = vpop.permute.xlu0 %1099
        %v1101 = vsel %vm815, %v1098, %v1100
        %v1102 = vsel %vm815, %v1096, %v1098
        %v1103 = vsel %vm815, %v1094, %v1096
        %v1104 = vsel %vm815, %v1100, %v1094
        %v1105 = vmul.f32 %v1103, %v826
        %v1106 = vmul.f32 %v1102, %v830
        %v1107 = vmul.f32 %v1101, %v834
        %v1108 = vmul.f32 %v1104, %v838
        %v1109 = vpack.c.bf16 %v1009, %v993
        %v1110 = vpack.c.bf16 %v1010, %v994
        %v1111 = vpack.c.bf16 %v1011, %v995
        %v1112 = vpack.c.bf16 %v1012, %v996
        %v1113 = vpack.c.bf16 %v1041, %v1025
        %v1114 = vpack.c.bf16 %v1042, %v1026
        %v1115 = vpack.c.bf16 %v1043, %v1027
        %v1116 = vpack.c.bf16 %v1044, %v1028
        %v1117 = vpack.c.bf16 %v1057, %v977
        %v1118 = vpack.c.bf16 %v1058, %v978
        %v1119 = vpack.c.bf16 %v1059, %v979
        %v1120 = vpack.c.bf16 %v1060, %v980
        %v1121 = vpack.c.bf16 %v1089, %v1073
        %v1122 = vpack.c.bf16 %v1090, %v1074
        %v1123 = vpack.c.bf16 %v1091, %v1075
        %v1124 = vpack.c.bf16 %v1092, %v1076
        %v1125 = vpack.c.bf16 %v1105, %v1105
        %v1126 = vpack.c.bf16 %v1106, %v1106
        %v1127 = vpack.c.bf16 %v1107, %v1107
        %v1128 = vpack.c.bf16 %v1108, %v1108
        %v1129 = vld [vmem:[%s5] sm:$0xf]
        %v1130 = vld [vmem:[%s6] sm:$0xff]
        %1132 = vset.pattern.permute.xlu0 0
        %1133 = vperm.xlu0 %1132, %v1130
        %v1134 = vpop.permute.xlu0 %1133
        %v1137 = vsel %vm874, %v1129, 0
        %v1140 = vsel %vm878, %v1125, 0
        %v1143 = vsel %vm878, %v1126, 0
        %v1146 = vsel %vm878, %v1127, 0
        %v1149 = vsel %vm878, %v1128, 0
        %1151 = vmatprep.subr.bf16.mxu0 %v1110
        %1152 = vmatpush1.bf16.msra.mxu0 %v1109
        %1153 = vmatprep.subr.bf16.mxu0 %v1114
        %1154 = vmatpush1.bf16.msra.mxu0 %v1113
        %1155 = vmatprep.subr.bf16.mxu0 %v1118
        %1156 = vmatpush1.bf16.msra.mxu0 %v1117
        %1157 = vmatprep.subr.bf16.mxu0 %v1122
        %1158 = vmatpush1.bf16.msra.mxu0 %v1121
        %1159 = vmatprep.subr.bf16.mxu0 %v1143
        %1160 = vmatpush1.bf16.msra.mxu0 %v1140
        %1161 = vmatprep.subr.bf16.mxu0 0
        %1162 = vmatpush1.bf16.msra.mxu0 0
        %1163 = vmatprep.subr.bf16.mxu0 0
        %1164 = vmatpush1.bf16.msra.mxu0 0
        %1165 = vmatprep.subr.bf16.mxu0 0
        %1166 = vmatpush1.bf16.msra.mxu0 0
        %1167 = vmatprep.subr.bf16.mxu0 0
        %1168 = vmatpush1.bf16.msra.mxu0 0
        %1169 = vmatprep.subr.bf16.mxu0 0
        %1170 = vmatpush1.bf16.msra.mxu0 0
        %1171 = vmatprep.subr.bf16.mxu0 0
        %1172 = vmatpush1.bf16.msra.mxu0 0
        %1173 = vmatprep.subr.bf16.mxu0 0
        %1174 = vmatpush1.bf16.msra.mxu0 0
        %1175 = vmatprep.subr.bf16.mxu0 0
        %1176 = vmatpush1.bf16.msra.mxu0 0
        %1177 = vmatprep.subr.bf16.mxu0 0
        %1178 = vmatpush1.bf16.msra.mxu0 0
        %1179 = vmatprep.subr.bf16.mxu0 0
        %1180 = vmatpush1.bf16.msra.mxu0 0
        %1181 = vmatprep.subr.bf16.mxu0 0
        %1182 = vmatpush1.bf16.msra.mxu0 0
        %1183 = vmatprep.mubr.bf16.mxu0 0
        %1184 = vmatmul.mubr.bf16.gmra.mrb[0].mxu0 %v1137
        %v1185 = vpop.f32.mrb[0].mxu0
        %v1186 = vadd.f32 %v1134, %v1185
        %v1187 = vpop.f32.mrb[0].mxu0
        %v1188 = vadd.f32 %v1134, %v1187
        %v1189 = vpop.f32.mrb[0].mxu0
        %v1190 = vpop.f32.mrb[0].mxu0
        %1191 = vdwg.mxu0
        %1192 = vmatprep.subr.bf16.mxu0 %v1112
        %1193 = vmatpush1.bf16.msra.mxu0 %v1111
        %1194 = vmatprep.subr.bf16.mxu0 %v1116
        %1195 = vmatpush1.bf16.msra.mxu0 %v1115
        %1196 = vmatprep.subr.bf16.mxu0 %v1120
        %1197 = vmatpush1.bf16.msra.mxu0 %v1119
        %1198 = vmatprep.subr.bf16.mxu0 %v1124
        %1199 = vmatpush1.bf16.msra.mxu0 %v1123
        %1200 = vmatprep.subr.bf16.mxu0 %v1149
        %1201 = vmatpush1.bf16.msra.mxu0 %v1146
        %1202 = vmatprep.subr.bf16.mxu0 0
        %1203 = vmatpush1.bf16.msra.mxu0 0
        %1204 = vmatprep.subr.bf16.mxu0 0
        %1205 = vmatpush1.bf16.msra.mxu0 0
        %1206 = vmatprep.subr.bf16.mxu0 0
        %1207 = vmatpush1.bf16.msra.mxu0 0
        %1208 = vmatprep.subr.bf16.mxu0 0
        %1209 = vmatpush1.bf16.msra.mxu0 0
        %1210 = vmatprep.subr.bf16.mxu0 0
        %1211 = vmatpush1.bf16.msra.mxu0 0
        %1212 = vmatprep.subr.bf16.mxu0 0
        %1213 = vmatpush1.bf16.msra.mxu0 0
        %1214 = vmatprep.subr.bf16.mxu0 0
        %1215 = vmatpush1.bf16.msra.mxu0 0
        %1216 = vmatprep.subr.bf16.mxu0 0
        %1217 = vmatpush1.bf16.msra.mxu0 0
        %1218 = vmatprep.subr.bf16.mxu0 0
        %1219 = vmatpush1.bf16.msra.mxu0 0
        %1220 = vmatprep.subr.bf16.mxu0 0
        %1221 = vmatpush1.bf16.msra.mxu0 0
        %1222 = vmatprep.subr.bf16.mxu0 0
        %1223 = vmatpush1.bf16.msra.mxu0 0
        %1224 = vmatprep.mubr.bf16.mxu0 0
        %1225 = vmatmul.mubr.bf16.gmra.mrb[0].mxu0 %v1137
        %v1226 = vpop.f32.mrb[0].mxu0
        %v1227 = vadd.f32 %v1134, %v1226
        %v1228 = vpop.f32.mrb[0].mxu0
        %v1229 = vadd.f32 %v1134, %v1228
        %v1230 = vpop.f32.mrb[0].mxu0
        %v1231 = vpop.f32.mrb[0].mxu0
        %1232 = vdwg.mxu0
        %v1233 = vld [vmem:[%s2] sm:$0xf]
        %v1235 = vlaneseq
        %v1236 = vshrl.u32 %v1235, 7
        %v1237 = vsub.s32 0, %v1236
        %v1238 = vrot.slane %v1233, %v1237
        %v1239 = vlaneseq
        %v1240 = vshrl.u32 %v1239, 7
        %v1241 = vsub.s32 1, %v1240
        %v1242 = vrot.slane %v1233, %v1241
        %v1243 = vlaneseq
        %v1244 = vshrl.u32 %v1243, 7
        %v1245 = vsub.s32 2, %v1244
        %v1246 = vrot.slane %v1233, %v1245
        %v1247 = vlaneseq
        %v1248 = vshrl.u32 %v1247, 7
        %v1249 = vsub.s32 3, %v1248
        %v1250 = vrot.slane %v1233, %v1249
        %v1255 = vmul.f32 %v1186, %v1238
        %v1256 = vmul.f32 %v1188, %v1242
        %v1257 = vmul.f32 %v1227, %v1246
        %v1258 = vmul.f32 %v1229, %v1250
        %v1259 = vadd.f32 %v1255, %v1256
        %v1260 = vadd.f32 %v1259, %v1257
        %v1261 = vadd.f32 %v1260, %v1258
        %1262 = vadd.xlane.f32.xlu0 %v1261
        %v1263 = vpop.xlane.xlu0 %1262
        %v1264 = vmul.f32 %v1263, 0.00390625
        %v1265 = vld [vmem:[%s7] sm:$0xff]
        %v1266 = vmul.f32 %v1265, %v1264
        %vm1267 = vcmask 7168
        %v1268 = vsel %vm1267, %v1266, 0.0
        %v1269 = vrot.slane %v1268, 4
        %v1270 = vadd.f32 %v1268, %v1269
        %v1271 = vrot.slane %v1270, 2
        %v1272 = vadd.f32 %v1270, %v1271
        %v1273 = vrot.slane %v1272, 1
        %v1274 = vadd.f32 %v1272, %v1273
        %v1275 = vld [vmem:[#allocation2] sm:$0x1]
        %v1276 = vadd.f32 %v1274, %v1275
        %v1277 = vmax.f32 %v1276, 0.0
        %v1278 = vld [vmem:[%s9] sm:$0xff]
        %v1279 = vlaneseq
        %v1280 = vshrl.u32 %v1279, 7
        %v1281 = vsub.s32 0, %v1280
        %v1282 = vrot.slane %v1277, %v1281
        %v1283 = vmul.f32 %v1278, %v1282
        %v1284 = vadd.f32 %v1283, 0.0
        %v1285 = vld [vmem:[%s10] sm:$0xff]
        %v1286 = vadd.f32 %v1284, %v1285
        %v1287 = vxor.u32 %v1286, 2147483648
        %v1288 = vmul.f32 %v1287, 1.442695
        %v1289 = vpow.pop %v1288
        %v1290 = vadd.f32 %v1289, 1.0
        %v1291 = vrcp.pop %v1290
        %v1292 = vmul.f32 1.0, %v1291
        %1294 = vset.pattern.permute.xlu0 0
        %1295 = vperm.xlu0 %1294, %v1292
        %v1296 = vpop.permute.xlu0 %1295
        %v1298 = vmul.f32 %v1296, %v1238
        %v1299 = vmul.f32 %v1296, %v1242
        %v1300 = vmul.f32 %v1296, %v1246
        %v1301 = vmul.f32 %v1296, %v1250
        %s1302 = scalar_lea.vmem %s2, 4
        %v1303 = vld [vmem:[%s1302] sm:$0xf]
        %v1305 = vlaneseq
        %v1306 = vshrl.u32 %v1305, 7
        %v1307 = vsub.s32 0, %v1306
        %v1308 = vrot.slane %v1303, %v1307
        %v1309 = vlaneseq
        %v1310 = vshrl.u32 %v1309, 7
        %v1311 = vsub.s32 1, %v1310
        %v1312 = vrot.slane %v1303, %v1311
        %v1313 = vlaneseq
        %v1314 = vshrl.u32 %v1313, 7
        %v1315 = vsub.s32 2, %v1314
        %v1316 = vrot.slane %v1303, %v1315
        %v1317 = vlaneseq
        %v1318 = vshrl.u32 %v1317, 7
        %v1319 = vsub.s32 3, %v1318
        %v1320 = vrot.slane %v1303, %v1319
        %v1325 = vmul.f32 %v1186, %v1308
        %v1326 = vmul.f32 %v1188, %v1312
        %v1327 = vmul.f32 %v1227, %v1316
        %v1328 = vmul.f32 %v1229, %v1320
        %v1329 = vadd.f32 %v1325, %v1326
        %v1330 = vadd.f32 %v1329, %v1327
        %v1331 = vadd.f32 %v1330, %v1328
        %1332 = vadd.xlane.f32.xlu0 %v1331
        %v1333 = vpop.xlane.xlu0 %1332
        %v1334 = vmul.f32 %v1333, 0.00390625
        %v1335 = vmul.f32 %v1265, %v1334
        %v1336 = vsel %vm1267, %v1335, 0.0
        %v1337 = vrot.slane %v1336, 4
        %v1338 = vadd.f32 %v1336, %v1337
        %v1339 = vrot.slane %v1338, 2
        %v1340 = vadd.f32 %v1338, %v1339
        %v1341 = vrot.slane %v1340, 1
        %v1342 = vadd.f32 %v1340, %v1341
        %v1343 = vadd.f32 %v1342, %v1275
        %v1344 = vmax.f32 %v1343, 0.0
        %v1345 = vlaneseq
        %v1346 = vshrl.u32 %v1345, 7
        %v1347 = vsub.s32 0, %v1346
        %v1348 = vrot.slane %v1344, %v1347
        %v1349 = vmul.f32 %v1278, %v1348
        %v1350 = vadd.f32 %v1349, 0.0
        %v1351 = vadd.f32 %v1350, %v1285
        %v1352 = vxor.u32 %v1351, 2147483648
        %v1353 = vmul.f32 %v1352, 1.442695
        %v1354 = vpow.pop %v1353
        %v1355 = vadd.f32 %v1354, 1.0
        %v1356 = vrcp.pop %v1355
        %v1357 = vmul.f32 1.0, %v1356
        %1359 = vset.pattern.permute.xlu0 0
        %1360 = vperm.xlu0 %1359, %v1357
        %v1361 = vpop.permute.xlu0 %1360
        %v1363 = vmul.f32 %v1361, %v1308
        %v1364 = vmul.f32 %v1361, %v1312
        %v1365 = vmul.f32 %v1361, %v1316
        %v1366 = vmul.f32 %v1361, %v1320
        %v1367 = vadd.f32 %v1298, %v1363
        %v1368 = vadd.f32 %v1299, %v1364
        %v1369 = vadd.f32 %v1300, %v1365
        %v1370 = vadd.f32 %v1301, %v1366
        %v1371 = vmul.f32 %v1186, %v1367
        %v1372 = vmul.f32 %v1188, %v1368
        %v1373 = vmul.f32 %v1227, %v1369
        %v1374 = vmul.f32 %v1229, %v1370
        %v1375 = vld [vmem:[%s11] sm:$0x1]
        %v1376 = vld [vmem:[#allocation3] sm:$0x1]
        %1378 = vset.pattern.permute.xlu0 0
        %1379 = vperm.xlu0 %1378, %v1376
        %v1380 = vpop.permute.xlu0 %1379
        %v1382 = vlaneseq
        %v1383 = vshrl.u32 %v1382, 7
        %v1384 = vsub.s32 0, %v1383
        %v1385 = vrot.slane %v1380, %v1384
        %vm1386 = vcmask 64512
        %v1388 = vsel %vm1386, %v1375, 0
        %1390 = vmatprep.subr.mxu0 %v1372
        %1391 = vmatpush1.msra.mxu0 %v1371
        %1392 = vmatprep.subr.mxu0 0.0
        %1393 = vmatpush1.msra.mxu0 0.0
        %1394 = vmatprep.subr.mxu0 0.0
        %1395 = vmatpush1.msra.mxu0 0.0
        %1396 = vmatprep.subr.mxu0 0.0
        %1397 = vmatpush1.msra.mxu0 0.0
        %1398 = vmatprep.subr.mxu0 0.0
        %1399 = vmatpush1.msra.mxu0 0.0
        %1400 = vmatprep.subr.mxu0 0.0
        %1401 = vmatpush1.msra.mxu0 0.0
        %1402 = vmatprep.subr.mxu0 0.0
        %1403 = vmatpush1.msra.mxu0 0.0
        %1404 = vmatprep.subr.mxu0 0.0
        %1405 = vmatpush1.msra.mxu0 0.0
        %1406 = vmatprep.subr.mxu0 0.0
        %1407 = vmatpush1.msra.mxu0 0.0
        %1408 = vmatprep.subr.mxu0 0.0
        %1409 = vmatpush1.msra.mxu0 0.0
        %1410 = vmatprep.subr.mxu0 0.0
        %1411 = vmatpush1.msra.mxu0 0.0
        %1412 = vmatprep.subr.mxu0 0.0
        %1413 = vmatpush1.msra.mxu0 0.0
        %1414 = vmatprep.subr.mxu0 0.0
        %1415 = vmatpush1.msra.mxu0 0.0
        %1416 = vmatprep.subr.mxu0 0.0
        %1417 = vmatpush1.msra.mxu0 0.0
        %1418 = vmatprep.subr.mxu0 0.0
        %1419 = vmatpush1.msra.mxu0 0.0
        %1420 = vmatprep.subr.mxu0 0.0
        %1421 = vmatpush1.msra.mxu0 0.0
        %1422 = vmatprep.subr.mxu0 0.0
        %1423 = vmatpush1.msra.mxu0 0.0
        %1424 = vmatprep.subr.mxu0 0.0
        %1425 = vmatpush1.msra.mxu0 0.0
        %1426 = vmatprep.subr.mxu0 0.0
        %1427 = vmatpush1.msra.mxu0 0.0
        %1428 = vmatprep.subr.mxu0 0.0
        %1429 = vmatpush1.msra.mxu0 0.0
        %1430 = vmatprep.subr.mxu0 0.0
        %1431 = vmatpush1.msra.mxu0 0.0
        %1432 = vmatprep.subr.mxu0 0.0
        %1433 = vmatpush1.msra.mxu0 0.0
        %1434 = vmatprep.subr.mxu0 0.0
        %1435 = vmatpush1.msra.mxu0 0.0
        %1436 = vmatprep.subr.mxu0 0.0
        %1437 = vmatpush1.msra.mxu0 0.0
        %1438 = vmatprep.subr.mxu0 0.0
        %1439 = vmatpush1.msra.mxu0 0.0
        %1440 = vmatprep.subr.mxu0 0.0
        %1441 = vmatpush1.msra.mxu0 0.0
        %1442 = vmatprep.subr.mxu0 0.0
        %1443 = vmatpush1.msra.mxu0 0.0
        %1444 = vmatprep.subr.mxu0 0.0
        %1445 = vmatpush1.msra.mxu0 0.0
        %1446 = vmatprep.subr.mxu0 0.0
        %1447 = vmatpush1.msra.mxu0 0.0
        %1448 = vmatprep.subr.mxu0 0.0
        %1449 = vmatpush1.msra.mxu0 0.0
        %1450 = vmatprep.subr.mxu0 0.0
        %1451 = vmatpush1.msra.mxu0 0.0
        %1452 = vmatprep.subr.mxu0 0.0
        %1453 = vmatpush1.msra.mxu0 0.0
        %1454 = vmatprep.mubr.f32.mxu0 0.0
        %1455 = vmatmul.mubr.f32.gmra.mrb[0].mxu0 %v1388
        %v1456 = vpop.f32.mrb[0].mxu0
        %v1457 = vadd.f32 %v1385, %v1456
        %v1458 = vpop.f32.mrb[0].mxu0
        %v1459 = vadd.f32 %v1385, %v1458
        %1460 = vdwg.mxu0
        %1461 = vmatprep.subr.mxu0 %v1374
        %1462 = vmatpush1.msra.mxu0 %v1373
        %1463 = vmatprep.subr.mxu0 0.0
        %1464 = vmatpush1.msra.mxu0 0.0
        %1465 = vmatprep.subr.mxu0 0.0
        %1466 = vmatpush1.msra.mxu0 0.0
        %1467 = vmatprep.subr.mxu0 0.0
        %1468 = vmatpush1.msra.mxu0 0.0
        %1469 = vmatprep.subr.mxu0 0.0
        %1470 = vmatpush1.msra.mxu0 0.0
        %1471 = vmatprep.subr.mxu0 0.0
        %1472 = vmatpush1.msra.mxu0 0.0
        %1473 = vmatprep.subr.mxu0 0.0
        %1474 = vmatpush1.msra.mxu0 0.0
        %1475 = vmatprep.subr.mxu0 0.0
        %1476 = vmatpush1.msra.mxu0 0.0
        %1477 = vmatprep.subr.mxu0 0.0
        %1478 = vmatpush1.msra.mxu0 0.0
        %1479 = vmatprep.subr.mxu0 0.0
        %1480 = vmatpush1.msra.mxu0 0.0
        %1481 = vmatprep.subr.mxu0 0.0
        %1482 = vmatpush1.msra.mxu0 0.0
        %1483 = vmatprep.subr.mxu0 0.0
        %1484 = vmatpush1.msra.mxu0 0.0
        %1485 = vmatprep.subr.mxu0 0.0
        %1486 = vmatpush1.msra.mxu0 0.0
        %1487 = vmatprep.subr.mxu0 0.0
        %1488 = vmatpush1.msra.mxu0 0.0
        %1489 = vmatprep.subr.mxu0 0.0
        %1490 = vmatpush1.msra.mxu0 0.0
        %1491 = vmatprep.subr.mxu0 0.0
        %1492 = vmatpush1.msra.mxu0 0.0
        %1493 = vmatprep.subr.mxu0 0.0
        %1494 = vmatpush1.msra.mxu0 0.0
        %1495 = vmatprep.subr.mxu0 0.0
        %1496 = vmatpush1.msra.mxu0 0.0
        %1497 = vmatprep.subr.mxu0 0.0
        %1498 = vmatpush1.msra.mxu0 0.0
        %1499 = vmatprep.subr.mxu0 0.0
        %1500 = vmatpush1.msra.mxu0 0.0
        %1501 = vmatprep.subr.mxu0 0.0
        %1502 = vmatpush1.msra.mxu0 0.0
        %1503 = vmatprep.subr.mxu0 0.0
        %1504 = vmatpush1.msra.mxu0 0.0
        %1505 = vmatprep.subr.mxu0 0.0
        %1506 = vmatpush1.msra.mxu0 0.0
        %1507 = vmatprep.subr.mxu0 0.0
        %1508 = vmatpush1.msra.mxu0 0.0
        %1509 = vmatprep.subr.mxu0 0.0
        %1510 = vmatpush1.msra.mxu0 0.0
        %1511 = vmatprep.subr.mxu0 0.0
        %1512 = vmatpush1.msra.mxu0 0.0
        %1513 = vmatprep.subr.mxu0 0.0
        %1514 = vmatpush1.msra.mxu0 0.0
        %1515 = vmatprep.subr.mxu0 0.0
        %1516 = vmatpush1.msra.mxu0 0.0
        %1517 = vmatprep.subr.mxu0 0.0
        %1518 = vmatpush1.msra.mxu0 0.0
        %1519 = vmatprep.subr.mxu0 0.0
        %1520 = vmatpush1.msra.mxu0 0.0
        %1521 = vmatprep.subr.mxu0 0.0
        %1522 = vmatpush1.msra.mxu0 0.0
        %1523 = vmatprep.subr.mxu0 0.0
        %1524 = vmatpush1.msra.mxu0 0.0
        %1525 = vmatprep.mubr.f32.mxu0 0.0
        %1526 = vmatmul.mubr.f32.gmra.mrb[0].mxu0 %v1388
        %v1527 = vpop.f32.mrb[0].mxu0
        %v1528 = vadd.f32 %v1385, %v1527
        %v1529 = vpop.f32.mrb[0].mxu0
        %v1530 = vadd.f32 %v1385, %v1529
        %1531 = vdwg.mxu0
        %v1532 = vmax.f32 %v1457, 0.0
        %v1533 = vmax.f32 %v1459, 0.0
        %v1534 = vmax.f32 %v1528, 0.0
        %v1535 = vmax.f32 %v1530, 0.0
        %v1536 = vld [vmem:[#allocation4] sm:$0x1]
        %1538 = vset.pattern.permute.xlu0 0
        %1539 = vperm.xlu0 %1538, %v1536
        %v1540 = vpop.permute.xlu0 %1539
        %v1542 = vlaneseq
        %v1543 = vshrl.u32 %v1542, 7
        %v1544 = vsub.s32 0, %v1543
        %v1545 = vrot.slane %v1540, %v1544
        %v1546 = vmul.f32 %v1545, %v1532
        %v1547 = vmul.f32 %v1545, %v1533
        %v1548 = vmul.f32 %v1545, %v1534
        %v1549 = vmul.f32 %v1545, %v1535
        %v1550 = vadd.f32 %v1546, 0.0
        %v1551 = vadd.f32 %v1547, 0.0
        %v1552 = vadd.f32 %v1548, 0.0
        %v1553 = vadd.f32 %v1549, 0.0
        %v1554 = vld [vmem:[#allocation5] sm:$0x1]
        %1556 = vset.pattern.permute.xlu0 0
        %1557 = vperm.xlu0 %1556, %v1554
        %v1558 = vpop.permute.xlu0 %1557
        %v1560 = vlaneseq
        %v1561 = vshrl.u32 %v1560, 7
        %v1562 = vsub.s32 0, %v1561
        %v1563 = vrot.slane %v1558, %v1562
        %v1564 = vadd.f32 %v1550, %v1563
        %v1565 = vadd.f32 %v1551, %v1563
        %v1566 = vadd.f32 %v1552, %v1563
        %v1567 = vadd.f32 %v1553, %v1563
        %v1568 = vxor.u32 %v1564, 2147483648
        %v1569 = vxor.u32 %v1565, 2147483648
        %v1570 = vxor.u32 %v1566, 2147483648
        %v1571 = vxor.u32 %v1567, 2147483648
        %v1572 = vmul.f32 %v1568, 1.442695
        %v1573 = vpow.pop %v1572
        %v1574 = vmul.f32 %v1569, 1.442695
        %v1575 = vpow.pop %v1574
        %v1576 = vmul.f32 %v1570, 1.442695
        %v1577 = vpow.pop %v1576
        %v1578 = vmul.f32 %v1571, 1.442695
        %v1579 = vpow.pop %v1578
        %v1580 = vadd.f32 %v1573, 1.0
        %v1581 = vadd.f32 %v1575, 1.0
        %v1582 = vadd.f32 %v1577, 1.0
        %v1583 = vadd.f32 %v1579, 1.0
        %v1584 = vrcp.pop %v1580
        %v1585 = vmul.f32 1.0, %v1584
        %v1586 = vrcp.pop %v1581
        %v1587 = vmul.f32 1.0, %v1586
        %v1588 = vrcp.pop %v1582
        %v1589 = vmul.f32 1.0, %v1588
        %v1590 = vrcp.pop %v1583
        %v1591 = vmul.f32 1.0, %v1590
        %v1592 = vlaneseq
        %v1593 = vshrl.u32 %v1592, 7
        %v1594 = vsub.s32 0, %v1593
        %v1595 = vrot.slane %v1585, %v1594
        %v1596 = vlaneseq
        %v1597 = vshrl.u32 %v1596, 7
        %v1598 = vsub.s32 0, %v1597
        %v1599 = vrot.slane %v1587, %v1598
        %v1600 = vlaneseq
        %v1601 = vshrl.u32 %v1600, 7
        %v1602 = vsub.s32 0, %v1601
        %v1603 = vrot.slane %v1589, %v1602
        %v1604 = vlaneseq
        %v1605 = vshrl.u32 %v1604, 7
        %v1606 = vsub.s32 0, %v1605
        %v1607 = vrot.slane %v1591, %v1606
        %v1608 = vmul.f32 %v1371, %v1595
        %v1609 = vmul.f32 %v1372, %v1599
        %v1610 = vmul.f32 %v1373, %v1603
        %v1611 = vmul.f32 %v1374, %v1607
        %v1612 = vadd.f32 %v522, %v1608
        %v1613 = vadd.f32 %v523, %v1609
        %v1614 = vadd.f32 %v524, %v1610
        %v1615 = vadd.f32 %v525, %v1611
        %1616 = vst [vmem:[%s518] sm:$0xff] %v1612
        %1617 = vst [vmem:[%s518 + $0x8] sm:$0xff] %v1613
        %1618 = vst [vmem:[%s518 + $0x10] sm:$0xff] %v1614
        %1619 = vst [vmem:[%s518 + $0x18] sm:$0xff] %v1615
        %s1620 = sand.u32 %s368, 1
        %s1621 = scalar_lea.sflag [#allocation8], %s1620
        %s1622 = sand.u32 %s368, 1
        %s1623 = smul.addr %s1622, 32
        %s1624 = scalar_lea.vmem [#allocation9], %s1623
        // Predicated region
        $region85: #{tpu_custom_call.1} parent=79 // pred_check
          %p1625 = pneg %p378
        $region86: #{tpu_custom_call.1} parent=79 // pred_check_branch
          %1627 = sbr.rel (%p1625) target = $region88
        $region87: #{tpu_custom_call.1} parent=79 // pred_region
          %s1628 = smul.u32 4, %s40
          %s1630 = ssub.s32 512, 512
          %1631 = vsyncadd %s1621, %s1630
          %s1632 = smul.addr %s1628, 128
          %s1633 = scalar_lea.hbm %s15, %s1632
          %s1635 = sshll.u32 %s1624, 4
          %s1636 = int_to_ptr.vmem [resolvable:$true] %s1635
          %1638 = dma.vmem_to_hbm [thread:$0]  %s1636, 512, %s1633, %s1621
        $region88: #{tpu_custom_call.1} parent=79 // pred_fallthru
          _
      $region80: #{tpu_custom_call.1} parent=5 // pred_fallthru
        _
      %p1639 = scmp.le.s32.totalorder 2, %s35
      // Predicated region
      $region89: #{tpu_custom_call.1} parent=5 // pred_check
        %p1640 = pneg %p1639
      $region90: #{tpu_custom_call.1} parent=5 // pred_check_branch
        %1642 = sbr.rel (%p1640) target = $region92
      $region91: #{tpu_custom_call.1} parent=5 // pred_region
        %s1643 = ssub.s32 %s35, 2
        // Predicated region
        $region93: #{tpu_custom_call.1} parent=91 // pred_check
          %p1644 = pneg %p384
        $region94: #{tpu_custom_call.1} parent=91 // pred_check_branch
          %1646 = sbr.rel (%p1644) target = $region96
        $region95: #{tpu_custom_call.1} parent=91 // pred_region
          %s1647 = sand.u32 %s369, 1
          %s1648 = scalar_lea.sflag [#allocation8], %s1647
          %s1649 = sand.u32 %s369, 1
          %s1650 = smul.addr %s1649, 32
          %s1651 = scalar_lea.vmem [#allocation9], %s1650
          %1652 = dma.done %s1648, 512
        $region96: #{tpu_custom_call.1} parent=91 // pred_fallthru
          _
      $region92: #{tpu_custom_call.1} parent=5 // pred_fallthru
        _
    $region6: #{tpu_custom_call.1} parent=1 // loop_footer
      %s39 = sadd.s32 1, %s35
    $region7: #{tpu_custom_call.1} parent=1 // loop_footer_branch
      %34 = sbr.rel target = $region3
    $region8: #{tpu_custom_call.1} parent=1 // loop_exit
      _
    %1653 = vsyncpa [#allocation7], 1
    %s1654 = scalar_lea.sflag [#allocation7], 1
    %1655 = vsyncpa %s1654, 1
    %1656 = vsyncpa [#allocation8], 1
    %s1657 = scalar_lea.sflag [#allocation8], 1
    %1658 = vsyncpa %s1657, 1

</llo_original>
